<compile_context>
chip_gen: v5e
topology: v5e:2x2
jax: 0.10.0
libtpu: 0.0.40
codegen_flags: <defaults>
</compile_context>

<pallas_src>
import jax
import jax.numpy as jnp
from jax import lax
from jax.experimental import pallas as pl
from jax.experimental.pallas import tpu as pltpu


def _round_up(x, m):
    return (x + m - 1) // m * m


# ---------------------------------------------------------------------------
# Fused Pallas kernel: maxpool 2x2 -> conv3x3+BN+ReLU -> conv3x3+BN+ReLU
# ---------------------------------------------------------------------------
def _fused_block_kernel(x_ref, w1_ref, s1_ref, b1_ref, w2_ref, s2_ref, b2_ref,
                        o_ref, pad1_ref, pad2_ref):
    # x_ref : (1, 2, 2, H2, W2, Cin) f32   pool-phase-major input, one batch elem
    # w1_ref: (9*Cin, C1p) bf16            im2col conv1 weights (tap-major rows)
    # s1/b1 : (1, C1p) f32                 folded conv bias + BN affine
    # w2_ref: (9*C1p, C2p) bf16            im2col conv2 weights
    # s2/b2 : (1, C2p) f32
    # o_ref : (1, H2*W2, C2p)              lane-dense output (C2p multiple of 128)
    # pad1  : (H2+2, W2+2, Cin) bf16       zero-haloed pooled input   (VMEM scratch)
    # pad2  : (H2+2, W2+2, C1p) bf16       zero-haloed conv1 output   (VMEM scratch)
    H2 = pad1_ref.shape[0] - 2
    W2 = pad1_ref.shape[1] - 2
    Cin = pad1_ref.shape[2]
    C1p = pad2_ref.shape[2]
    C2p = o_ref.shape[2]
    HW = H2 * W2

    # Zero ONLY the halo border strips (interior is fully overwritten below).
    for ref, c in ((pad1_ref, Cin), (pad2_ref, C1p)):
        zrow = jnp.zeros((1, W2 + 2, c), ref.dtype)
        zcol = jnp.zeros((H2 + 2, 1, c), ref.dtype)
        ref[0:1, :, :] = zrow
        ref[H2 + 1:H2 + 2, :, :] = zrow
        ref[:, 0:1, :] = zcol
        ref[:, W2 + 1:W2 + 2, :] = zcol

    # ---- stage 1: 2x2 / stride-2 max pool -----------------------------------
    # Pooling phases were pre-split by the wrapper, so each tap is a plain
    # contiguous (H2, W2, Cin) read -- no strided ref indexing.
    xv = x_ref[...]
    p00 = xv[0, 0, 0]
    p01 = xv[0, 0, 1]
    p10 = xv[0, 1, 0]
    p11 = xv[0, 1, 1]
    pooled = jnp.maximum(jnp.maximum(p00, p01), jnp.maximum(p10, p11))
    pad1_ref[1:H2 + 1, 1:W2 + 1, :] = pooled.astype(pad1_ref.dtype)  # cast once

    # ---- stage 2: conv1 as ONE im2col matmul (K = 9*Cin), f32 accumulate -----
    col1 = jnp.concatenate(
        [pad1_ref[ky:ky + H2, kx:kx + W2, :].reshape(HW, Cin)
         for ky in range(3) for kx in range(3)], axis=1)           # (HW, 9*Cin) bf16
    acc1 = jnp.dot(col1, w1_ref[...], preferred_element_type=jnp.float32)
    y1 = jnp.maximum(acc1 * s1_ref[...] + b1_ref[...], 0.0)        # BN + ReLU (f32)
    pad2_ref[1:H2 + 1, 1:W2 + 1, :] = (
        y1.astype(pad2_ref.dtype).reshape(H2, W2, C1p))            # cast once

    # ---- stage 3: conv2, input resident in VMEM (K = 9*C1p) ------------------
    col2 = jnp.concatenate(
        [pad2_ref[ky:ky + H2, kx:kx + W2, :].reshape(HW, C1p)
         for ky in range(3) for kx in range(3)], axis=1)           # (HW, 9*C1p) bf16
    acc2 = jnp.dot(col2, w2_ref[...], preferred_element_type=jnp.float32)
    y2 = jnp.maximum(acc2 * s2_ref[...] + b2_ref[...], 0.0)
    o_ref[...] = y2.astype(o_ref.dtype).reshape(1, HW, C2p)        # lane-dense store


# ---------------------------------------------------------------------------
# Wrapper (NCHW public interface, channels-last inside)
# ---------------------------------------------------------------------------
def encoder_block_yb_forward(x_nchw, params, ch_out):
    N, Cin, H, W = x_nchw.shape
    assert H % 2 == 0 and W % 2 == 0, "MaxPool2d(2,2) path assumes even H, W"
    H2, W2 = H // 2, W // 2
    C1p = params["scale1"].shape[1]
    C2p = params["scale2"].shape[1]

    # NCHW -> (N, 2, 2, H2, W2, Cin): ONE fused XLA transpose (same HBM cost as
    # the plain NCHW->NHWC transpose) that also pre-separates the pooling phases.
    x6 = x_nchw.reshape(N, Cin, H2, 2, W2, 2)
    x6 = jnp.transpose(x6, (0, 3, 5, 2, 4, 1))

    out = pl.pallas_call(
        _fused_block_kernel,
        out_shape=jax.ShapeDtypeStruct((N, H2 * W2, C2p), x_nchw.dtype),
        grid=(N,),
        in_specs=[
            pl.BlockSpec((1, 2, 2, H2, W2, Cin), lambda b: (b, 0, 0, 0, 0, 0)),
            pl.BlockSpec((9 * Cin, C1p), lambda b: (0, 0)),   # resident weights
            pl.BlockSpec((1, C1p), lambda b: (0, 0)),
            pl.BlockSpec((1, C1p), lambda b: (0, 0)),
            pl.BlockSpec((9 * C1p, C2p), lambda b: (0, 0)),   # resident weights
            pl.BlockSpec((1, C2p), lambda b: (0, 0)),
            pl.BlockSpec((1, C2p), lambda b: (0, 0)),
        ],
        out_specs=pl.BlockSpec((1, H2 * W2, C2p), lambda b: (b, 0, 0)),
        scratch_shapes=[
            pltpu.VMEM((H2 + 2, W2 + 2, Cin), jnp.bfloat16),   # bf16 halo scratch
            pltpu.VMEM((H2 + 2, W2 + 2, C1p), jnp.bfloat16),   # bf16 halo scratch
        ],
        compiler_params=pltpu.CompilerParams(
            dimension_semantics=("parallel",),
            vmem_limit_bytes=48 * 1024 * 1024),
    )(x6, params["w1"], params["scale1"], params["shift1"],
      params["w2"], params["scale2"], params["shift2"])

    out = out.reshape(N, H2, W2, C2p)[:, :, :, :ch_out]   # drop lane pad (glue)
    return jnp.transpose(out, (0, 3, 1, 2))               # -> NCHW (glue)


# ---------------------------------------------------------------------------
# Synthetic parameters (PyTorch layout) + kernel-side preparation
# ---------------------------------------------------------------------------
def init_torch_params(key, ch_in, ch_out):
    """Synthetic params in PyTorch layout: conv (cout,cin,3,3), bias, BN stats."""
    ks = jax.random.split(key, 12)

    def layer(kw, kb, kg, kbt, km, kv, cin, cout):
        w = jax.random.normal(kw, (cout, cin, 3, 3), jnp.float32) / jnp.sqrt(9.0 * cin)
        b = 0.1 * jax.random.normal(kb, (cout,), jnp.float32)
        gamma = 1.0 + 0.1 * jax.random.normal(kg, (cout,), jnp.float32)
        beta = 0.1 * jax.random.normal(kbt, (cout,), jnp.float32)
        mean = 0.1 * jax.random.normal(km, (cout,), jnp.float32)
        var = 1.0 + 0.1 * jnp.abs(jax.random.normal(kv, (cout,), jnp.float32))
        return dict(w=w, b=b, gamma=gamma, beta=beta, mean=mean, var=var)

    l1 = layer(*ks[0:6], ch_in, ch_out)
    l2 = layer(*ks[6:12], ch_out, ch_out)
    return l1, l2


def prepare_kernel_params(l1, l2, eps=1e-5):
    """Fold eval-mode BN + conv bias into (scale, shift); build im2col weight
    matrices (9*cin, cout_pad) with cout padded to a multiple of 128; bf16 cast."""

    def fold(layer, cin_pad, cout_pad):
        w = layer["w"]                                    # (cout, cin, 3, 3)
        cout, cin = w.shape[0], w.shape[1]
        w9 = jnp.transpose(w, (2, 3, 1, 0))               # (ky, kx, cin, cout)
        w9 = jnp.pad(w9, ((0, 0), (0, 0), (0, cin_pad - cin), (0, cout_pad - cout)))
        w_mat = w9.reshape(9 * cin_pad, cout_pad)          # tap-major rows
        scale = layer["gamma"] / jnp.sqrt(layer["var"] + eps)
        shift = layer["beta"] + (layer["b"] - layer["mean"]) * scale
        scale = jnp.pad(scale, (0, cout_pad - cout)).reshape(1, cout_pad)
        shift = jnp.pad(shift, (0, cout_pad - cout)).reshape(1, cout_pad)
        return (w_mat.astype(jnp.bfloat16),
                scale.astype(jnp.float32), shift.astype(jnp.float32))

    ch_in = l1["w"].shape[1]
    ch_out = l1["w"].shape[0]
    C1p = _round_up(ch_out, 128)
    C2p = _round_up(ch_out, 128)
    w1, s1, b1 = fold(l1, ch_in, C1p)    # conv1: K = 9*Cin
    w2, s2, b2 = fold(l2, C1p, C2p)      # conv2: K = 9*C1p (lane-padded conv1 out)
    return dict(w1=w1, scale1=s1, shift1=b1, w2=w2, scale2=s2, shift2=b2)


# ---------------------------------------------------------------------------
# Pure-JAX reference (mirrors the kernel's MXU precision: bf16 conv inputs,
# f32 accumulation, f32 BN affine + ReLU)
# ---------------------------------------------------------------------------
def reference_forward(x_nchw, l1, l2, eps=1e-5):
    x = jnp.transpose(x_nchw, (0, 2, 3, 1))
    x = lax.reduce_window(x, -jnp.inf, lax.max, (1, 2, 2, 1), (1, 2, 2, 1), "VALID")

    def conv_bn_relu(x, layer):
        w = jnp.transpose(layer["w"], (2, 3, 1, 0))      # HWIO
        y = lax.conv_general_dilated(
            x.astype(jnp.bfloat16), w.astype(jnp.bfloat16), (1, 1), "SAME",
            dimension_numbers=("NHWC", "HWIO", "NHWC"),
            preferred_element_type=jnp.float32)
        scale = layer["gamma"] / jnp.sqrt(layer["var"] + eps)
        shift = layer["beta"] + (layer["b"] - layer["mean"]) * scale
        y = y * scale.reshape(1, 1, 1, -1) + shift.reshape(1, 1, 1, -1)
        return jnp.maximum(y, 0.0)

    x = conv_bn_relu(x, l1)
    x = conv_bn_relu(x, l2)
    return jnp.transpose(x, (0, 3, 1, 2))


if __name__ == "__main__":
    key = jax.random.PRNGKey(0)
    kx, kp = jax.random.split(key)

    N, ch_in, H, W = 2, 4, 16, 16
    ch_out = 8
    x = jax.random.normal(kx, (N, ch_in, H, W), jnp.float32)

    l1, l2 = init_torch_params(kp, ch_in, ch_out)
    params = prepare_kernel_params(l1, l2)

    fwd = jax.jit(encoder_block_yb_forward, static_argnums=2)
    out = jax.block_until_ready(fwd(x, params, ch_out))
    assert out.shape == (N, ch_out, H // 2, W // 2), out.shape

    ref = reference_forward(x, l1, l2)
    if not jnp.allclose(out, ref, atol=1e-2, rtol=1e-2):
        max_err = float(jnp.max(jnp.abs(out - ref)))
        raise AssertionError(f"kernel/reference mismatch, max abs err = {max_err}")

    print("KERNEL_OK")
</pallas_src>

<mosaic_0001>
module attributes {stable_mosaic.version = 11 : i64} {
  func.func @_fused_block_kernel(%arg0: i32, %arg1: memref<1x2x2x8x8x4xf32, #tpu.memory_space<vmem>>, %arg2: memref<36x128xbf16, #tpu.memory_space<vmem>>, %arg3: memref<1x128xf32, #tpu.memory_space<vmem>>, %arg4: memref<1x128xf32, #tpu.memory_space<vmem>>, %arg5: memref<1152x128xbf16, #tpu.memory_space<vmem>>, %arg6: memref<1x128xf32, #tpu.memory_space<vmem>>, %arg7: memref<1x128xf32, #tpu.memory_space<vmem>>, %arg8: memref<1x64x128xf32, #tpu.memory_space<vmem>>, %arg9: memref<10x10x4xbf16, #tpu.memory_space<vmem>>, %arg10: memref<10x10x128xbf16, #tpu.memory_space<vmem>>) attributes {dimension_semantics = [#tpu.dimension_semantics<parallel>], iteration_bounds = array<i64: 2>, scalar_prefetch = 0 : i64, scratch_operands = 2 : i64, tpu.core_type = #tpu.core_type<tc>, window_params = [{transform_indices = @transform_0, window_bounds = array<i64: 1, 2, 2, 8, 8, 4>}, {pipeline_mode = #tpu.pipeline_mode<synchronous>, transform_indices = @transform_1, window_bounds = array<i64: 36, 128>}, {pipeline_mode = #tpu.pipeline_mode<synchronous>, transform_indices = @transform_2, window_bounds = array<i64: 1, 128>}, {pipeline_mode = #tpu.pipeline_mode<synchronous>, transform_indices = @transform_3, window_bounds = array<i64: 1, 128>}, {pipeline_mode = #tpu.pipeline_mode<synchronous>, transform_indices = @transform_4, window_bounds = array<i64: 1152, 128>}, {pipeline_mode = #tpu.pipeline_mode<synchronous>, transform_indices = @transform_5, window_bounds = array<i64: 1, 128>}, {pipeline_mode = #tpu.pipeline_mode<synchronous>, transform_indices = @transform_6, window_bounds = array<i64: 1, 128>}, {transform_indices = @transform_7, window_bounds = array<i64: 1, 64, 128>}]} {
    %cst = arith.constant 0.000000e+00 : bf16
    %0 = vector.broadcast %cst : bf16 to vector<1x10x4xbf16>
    %cst_0 = arith.constant 0.000000e+00 : bf16
    %1 = vector.broadcast %cst_0 : bf16 to vector<10x1x4xbf16>
    %c0 = arith.constant 0 : index
    %c0_1 = arith.constant 0 : index
    %c0_2 = arith.constant 0 : index
    %2 = vector.load %arg9[%c0, %c0_1, %c0_2] : memref<10x10x4xbf16, #tpu.memory_space<vmem>>, vector<1x10x4xbf16>
    tpu.vector_store %arg9[%c0, %c0_1, %c0_2], %0 {strides = array<i32>} : memref<10x10x4xbf16, #tpu.memory_space<vmem>>, vector<1x10x4xbf16>,
    %c9 = arith.constant 9 : index
    %c0_3 = arith.constant 0 : index
    %c0_4 = arith.constant 0 : index
    %3 = vector.load %arg9[%c9, %c0_3, %c0_4] : memref<10x10x4xbf16, #tpu.memory_space<vmem>>, vector<1x10x4xbf16>
    tpu.vector_store %arg9[%c9, %c0_3, %c0_4], %0 {strides = array<i32>} : memref<10x10x4xbf16, #tpu.memory_space<vmem>>, vector<1x10x4xbf16>,
    %c0_5 = arith.constant 0 : index
    %c0_6 = arith.constant 0 : index
    %c0_7 = arith.constant 0 : index
    %4 = vector.load %arg9[%c0_5, %c0_6, %c0_7] : memref<10x10x4xbf16, #tpu.memory_space<vmem>>, vector<10x1x4xbf16>
    tpu.vector_store %arg9[%c0_5, %c0_6, %c0_7], %1 {strides = array<i32>} : memref<10x10x4xbf16, #tpu.memory_space<vmem>>, vector<10x1x4xbf16>,
    %c0_8 = arith.constant 0 : index
    %c9_9 = arith.constant 9 : index
    %c0_10 = arith.constant 0 : index
    %5 = vector.load %arg9[%c0_8, %c9_9, %c0_10] : memref<10x10x4xbf16, #tpu.memory_space<vmem>>, vector<10x1x4xbf16>
    tpu.vector_store %arg9[%c0_8, %c9_9, %c0_10], %1 {strides = array<i32>} : memref<10x10x4xbf16, #tpu.memory_space<vmem>>, vector<10x1x4xbf16>,
    %cst_11 = arith.constant 0.000000e+00 : bf16
    %6 = vector.broadcast %cst_11 : bf16 to vector<1x10x128xbf16>
    %cst_12 = arith.constant 0.000000e+00 : bf16
    %7 = vector.broadcast %cst_12 : bf16 to vector<10x1x128xbf16>
    %c0_13 = arith.constant 0 : index
    %c0_14 = arith.constant 0 : index
    %c0_15 = arith.constant 0 : index
    %8 = vector.load %arg10[%c0_13, %c0_14, %c0_15] : memref<10x10x128xbf16, #tpu.memory_space<vmem>>, vector<1x10x128xbf16>
    tpu.vector_store %arg10[%c0_13, %c0_14, %c0_15], %6 {strides = array<i32>} : memref<10x10x128xbf16, #tpu.memory_space<vmem>>, vector<1x10x128xbf16>,
    %c9_16 = arith.constant 9 : index
    %c0_17 = arith.constant 0 : index
    %c0_18 = arith.constant 0 : index
    %9 = vector.load %arg10[%c9_16, %c0_17, %c0_18] : memref<10x10x128xbf16, #tpu.memory_space<vmem>>, vector<1x10x128xbf16>
    tpu.vector_store %arg10[%c9_16, %c0_17, %c0_18], %6 {strides = array<i32>} : memref<10x10x128xbf16, #tpu.memory_space<vmem>>, vector<1x10x128xbf16>,
    %c0_19 = arith.constant 0 : index
    %c0_20 = arith.constant 0 : index
    %c0_21 = arith.constant 0 : index
    %10 = vector.load %arg10[%c0_19, %c0_20, %c0_21] : memref<10x10x128xbf16, #tpu.memory_space<vmem>>, vector<10x1x128xbf16>
    tpu.vector_store %arg10[%c0_19, %c0_20, %c0_21], %7 {strides = array<i32>} : memref<10x10x128xbf16, #tpu.memory_space<vmem>>, vector<10x1x128xbf16>,
    %c0_22 = arith.constant 0 : index
    %c9_23 = arith.constant 9 : index
    %c0_24 = arith.constant 0 : index
    %11 = vector.load %arg10[%c0_22, %c9_23, %c0_24] : memref<10x10x128xbf16, #tpu.memory_space<vmem>>, vector<10x1x128xbf16>
    tpu.vector_store %arg10[%c0_22, %c9_23, %c0_24], %7 {strides = array<i32>} : memref<10x10x128xbf16, #tpu.memory_space<vmem>>, vector<10x1x128xbf16>,
    %c0_25 = arith.constant 0 : index
    %c0_26 = arith.constant 0 : index
    %c0_27 = arith.constant 0 : index
    %c0_28 = arith.constant 0 : index
    %c0_29 = arith.constant 0 : index
    %c0_30 = arith.constant 0 : index
    %12 = vector.load %arg1[%c0_25, %c0_26, %c0_27, %c0_28, %c0_29, %c0_30] : memref<1x2x2x8x8x4xf32, #tpu.memory_space<vmem>>, vector<1x2x2x8x8x4xf32>
    %13 = vector.extract_strided_slice %12 {offsets = [0, 0, 0, 0, 0, 0], sizes = [1, 1, 1, 8, 8, 4], strides = [1, 1, 1, 1, 1, 1]} : vector<1x2x2x8x8x4xf32> to vector<1x1x1x8x8x4xf32>
    %14 = vector.shape_cast %13 : vector<1x1x1x8x8x4xf32> to vector<8x8x4xf32>
    %15 = vector.extract_strided_slice %12 {offsets = [0, 0, 1, 0, 0, 0], sizes = [1, 1, 1, 8, 8, 4], strides = [1, 1, 1, 1, 1, 1]} : vector<1x2x2x8x8x4xf32> to vector<1x1x1x8x8x4xf32>
    %16 = vector.shape_cast %15 : vector<1x1x1x8x8x4xf32> to vector<8x8x4xf32>
    %17 = vector.extract_strided_slice %12 {offsets = [0, 1, 0, 0, 0, 0], sizes = [1, 1, 1, 8, 8, 4], strides = [1, 1, 1, 1, 1, 1]} : vector<1x2x2x8x8x4xf32> to vector<1x1x1x8x8x4xf32>
    %18 = vector.shape_cast %17 : vector<1x1x1x8x8x4xf32> to vector<8x8x4xf32>
    %19 = vector.extract_strided_slice %12 {offsets = [0, 1, 1, 0, 0, 0], sizes = [1, 1, 1, 8, 8, 4], strides = [1, 1, 1, 1, 1, 1]} : vector<1x2x2x8x8x4xf32> to vector<1x1x1x8x8x4xf32>
    %20 = vector.shape_cast %19 : vector<1x1x1x8x8x4xf32> to vector<8x8x4xf32>
    %21 = arith.maximumf %14, %16 : vector<8x8x4xf32>
    %22 = arith.maximumf %18, %20 : vector<8x8x4xf32>
    %23 = arith.maximumf %21, %22 : vector<8x8x4xf32>
    %24 = arith.truncf %23 : vector<8x8x4xf32> to vector<8x8x4xbf16>
    %c1 = arith.constant 1 : index
    %c1_31 = arith.constant 1 : index
    %c0_32 = arith.constant 0 : index
    %25 = vector.load %arg9[%c1, %c1_31, %c0_32] : memref<10x10x4xbf16, #tpu.memory_space<vmem>>, vector<8x8x4xbf16>
    tpu.vector_store %arg9[%c1, %c1_31, %c0_32], %24 {strides = array<i32>} : memref<10x10x4xbf16, #tpu.memory_space<vmem>>, vector<8x8x4xbf16>,
    %c0_33 = arith.constant 0 : index
    %c0_34 = arith.constant 0 : index
    %c0_35 = arith.constant 0 : index
    %26 = vector.load %arg9[%c0_33, %c0_34, %c0_35] : memref<10x10x4xbf16, #tpu.memory_space<vmem>>, vector<8x8x4xbf16>
    %27 = vector.shape_cast %26 : vector<8x8x4xbf16> to vector<64x4xbf16>
    %c0_36 = arith.constant 0 : index
    %c1_37 = arith.constant 1 : index
    %c0_38 = arith.constant 0 : index
    %28 = vector.load %arg9[%c0_36, %c1_37, %c0_38] : memref<10x10x4xbf16, #tpu.memory_space<vmem>>, vector<8x8x4xbf16>
    %29 = vector.shape_cast %28 : vector<8x8x4xbf16> to vector<64x4xbf16>
    %c0_39 = arith.constant 0 : index
    %c2 = arith.constant 2 : index
    %c0_40 = arith.constant 0 : index
    %30 = vector.load %arg9[%c0_39, %c2, %c0_40] : memref<10x10x4xbf16, #tpu.memory_space<vmem>>, vector<8x8x4xbf16>
    %31 = vector.shape_cast %30 : vector<8x8x4xbf16> to vector<64x4xbf16>
    %c1_41 = arith.constant 1 : index
    %c0_42 = arith.constant 0 : index
    %c0_43 = arith.constant 0 : index
    %32 = vector.load %arg9[%c1_41, %c0_42, %c0_43] : memref<10x10x4xbf16, #tpu.memory_space<vmem>>, vector<8x8x4xbf16>
    %33 = vector.shape_cast %32 : vector<8x8x4xbf16> to vector<64x4xbf16>
    %c1_44 = arith.constant 1 : index
    %c1_45 = arith.constant 1 : index
    %c0_46 = arith.constant 0 : index
    %34 = vector.load %arg9[%c1_44, %c1_45, %c0_46] : memref<10x10x4xbf16, #tpu.memory_space<vmem>>, vector<8x8x4xbf16>
    %35 = vector.shape_cast %34 : vector<8x8x4xbf16> to vector<64x4xbf16>
    %c1_47 = arith.constant 1 : index
    %c2_48 = arith.constant 2 : index
    %c0_49 = arith.constant 0 : index
    %36 = vector.load %arg9[%c1_47, %c2_48, %c0_49] : memref<10x10x4xbf16, #tpu.memory_space<vmem>>, vector<8x8x4xbf16>
    %37 = vector.shape_cast %36 : vector<8x8x4xbf16> to vector<64x4xbf16>
    %c2_50 = arith.constant 2 : index
    %c0_51 = arith.constant 0 : index
    %c0_52 = arith.constant 0 : index
    %38 = vector.load %arg9[%c2_50, %c0_51, %c0_52] : memref<10x10x4xbf16, #tpu.memory_space<vmem>>, vector<8x8x4xbf16>
    %39 = vector.shape_cast %38 : vector<8x8x4xbf16> to vector<64x4xbf16>
    %c2_53 = arith.constant 2 : index
    %c1_54 = arith.constant 1 : index
    %c0_55 = arith.constant 0 : index
    %40 = vector.load %arg9[%c2_53, %c1_54, %c0_55] : memref<10x10x4xbf16, #tpu.memory_space<vmem>>, vector<8x8x4xbf16>
    %41 = vector.shape_cast %40 : vector<8x8x4xbf16> to vector<64x4xbf16>
    %c2_56 = arith.constant 2 : index
    %c2_57 = arith.constant 2 : index
    %c0_58 = arith.constant 0 : index
    %42 = vector.load %arg9[%c2_56, %c2_57, %c0_58] : memref<10x10x4xbf16, #tpu.memory_space<vmem>>, vector<8x8x4xbf16>
    %43 = vector.shape_cast %42 : vector<8x8x4xbf16> to vector<64x4xbf16>
    %44 = tpu.concatenate %27, %29, %31, %33, %35, %37, %39, %41, %43 in 1 : vector<64x4xbf16>, vector<64x4xbf16>, vector<64x4xbf16>, vector<64x4xbf16>, vector<64x4xbf16>, vector<64x4xbf16>, vector<64x4xbf16>, vector<64x4xbf16>, vector<64x4xbf16> -> vector<64x36xbf16>
    %c0_59 = arith.constant 0 : index
    %c0_60 = arith.constant 0 : index
    %45 = vector.load %arg2[%c0_59, %c0_60] : memref<36x128xbf16, #tpu.memory_space<vmem>>, vector<36x128xbf16>
    %cst_61 = arith.constant dense<0.000000e+00> : vector<64x128xf32>
    %46 = tpu.matmul %44, %45, %cst_61 {dimension_numbers = #tpu.dot_dimension_numbers<[1], [0], [0], [1], [0, 0, 1, 1], [], []>} : vector<64x36xbf16>, vector<36x128xbf16>, vector<64x128xf32> -> vector<64x128xf32>
    %c0_62 = arith.constant 0 : index
    %c0_63 = arith.constant 0 : index
    %47 = vector.load %arg3[%c0_62, %c0_63] : memref<1x128xf32, #tpu.memory_space<vmem>>, vector<1x128xf32>
    %48 = vector.broadcast %47 : vector<1x128xf32> to vector<64x128xf32>
    %49 = arith.mulf %46, %48 : vector<64x128xf32>
    %c0_64 = arith.constant 0 : index
    %c0_65 = arith.constant 0 : index
    %50 = vector.load %arg4[%c0_64, %c0_65] : memref<1x128xf32, #tpu.memory_space<vmem>>, vector<1x128xf32>
    %51 = vector.broadcast %50 : vector<1x128xf32> to vector<64x128xf32>
    %52 = arith.addf %49, %51 : vector<64x128xf32>
    %cst_66 = arith.constant 0.000000e+00 : f32
    %53 = vector.broadcast %cst_66 : f32 to vector<64x128xf32>
    %54 = arith.maximumf %52, %53 : vector<64x128xf32>
    %55 = arith.truncf %54 : vector<64x128xf32> to vector<64x128xbf16>
    %56 = vector.shape_cast %55 : vector<64x128xbf16> to vector<8x8x128xbf16>
    %c1_67 = arith.constant 1 : index
    %c1_68 = arith.constant 1 : index
    %c0_69 = arith.constant 0 : index
    %57 = vector.load %arg10[%c1_67, %c1_68, %c0_69] : memref<10x10x128xbf16, #tpu.memory_space<vmem>>, vector<8x8x128xbf16>
    tpu.vector_store %arg10[%c1_67, %c1_68, %c0_69], %56 {strides = array<i32>} : memref<10x10x128xbf16, #tpu.memory_space<vmem>>, vector<8x8x128xbf16>,
    %c0_70 = arith.constant 0 : index
    %c0_71 = arith.constant 0 : index
    %c0_72 = arith.constant 0 : index
    %58 = vector.load %arg10[%c0_70, %c0_71, %c0_72] : memref<10x10x128xbf16, #tpu.memory_space<vmem>>, vector<8x8x128xbf16>
    %59 = vector.shape_cast %58 : vector<8x8x128xbf16> to vector<64x128xbf16>
    %c0_73 = arith.constant 0 : index
    %c1_74 = arith.constant 1 : index
    %c0_75 = arith.constant 0 : index
    %60 = vector.load %arg10[%c0_73, %c1_74, %c0_75] : memref<10x10x128xbf16, #tpu.memory_space<vmem>>, vector<8x8x128xbf16>
    %61 = vector.shape_cast %60 : vector<8x8x128xbf16> to vector<64x128xbf16>
    %c0_76 = arith.constant 0 : index
    %c2_77 = arith.constant 2 : index
    %c0_78 = arith.constant 0 : index
    %62 = vector.load %arg10[%c0_76, %c2_77, %c0_78] : memref<10x10x128xbf16, #tpu.memory_space<vmem>>, vector<8x8x128xbf16>
    %63 = vector.shape_cast %62 : vector<8x8x128xbf16> to vector<64x128xbf16>
    %c1_79 = arith.constant 1 : index
    %c0_80 = arith.constant 0 : index
    %c0_81 = arith.constant 0 : index
    %64 = vector.load %arg10[%c1_79, %c0_80, %c0_81] : memref<10x10x128xbf16, #tpu.memory_space<vmem>>, vector<8x8x128xbf16>
    %65 = vector.shape_cast %64 : vector<8x8x128xbf16> to vector<64x128xbf16>
    %c1_82 = arith.constant 1 : index
    %c1_83 = arith.constant 1 : index
    %c0_84 = arith.constant 0 : index
    %66 = vector.load %arg10[%c1_82, %c1_83, %c0_84] : memref<10x10x128xbf16, #tpu.memory_space<vmem>>, vector<8x8x128xbf16>
    %67 = vector.shape_cast %66 : vector<8x8x128xbf16> to vector<64x128xbf16>
    %c1_85 = arith.constant 1 : index
    %c2_86 = arith.constant 2 : index
    %c0_87 = arith.constant 0 : index
    %68 = vector.load %arg10[%c1_85, %c2_86, %c0_87] : memref<10x10x128xbf16, #tpu.memory_space<vmem>>, vector<8x8x128xbf16>
    %69 = vector.shape_cast %68 : vector<8x8x128xbf16> to vector<64x128xbf16>
    %c2_88 = arith.constant 2 : index
    %c0_89 = arith.constant 0 : index
    %c0_90 = arith.constant 0 : index
    %70 = vector.load %arg10[%c2_88, %c0_89, %c0_90] : memref<10x10x128xbf16, #tpu.memory_space<vmem>>, vector<8x8x128xbf16>
    %71 = vector.shape_cast %70 : vector<8x8x128xbf16> to vector<64x128xbf16>
    %c2_91 = arith.constant 2 : index
    %c1_92 = arith.constant 1 : index
    %c0_93 = arith.constant 0 : index
    %72 = vector.load %arg10[%c2_91, %c1_92, %c0_93] : memref<10x10x128xbf16, #tpu.memory_space<vmem>>, vector<8x8x128xbf16>
    %73 = vector.shape_cast %72 : vector<8x8x128xbf16> to vector<64x128xbf16>
    %c2_94 = arith.constant 2 : index
    %c2_95 = arith.constant 2 : index
    %c0_96 = arith.constant 0 : index
    %74 = vector.load %arg10[%c2_94, %c2_95, %c0_96] : memref<10x10x128xbf16, #tpu.memory_space<vmem>>, vector<8x8x128xbf16>
    %75 = vector.shape_cast %74 : vector<8x8x128xbf16> to vector<64x128xbf16>
    %76 = tpu.concatenate %59, %61, %63, %65, %67, %69, %71, %73, %75 in 1 : vector<64x128xbf16>, vector<64x128xbf16>, vector<64x128xbf16>, vector<64x128xbf16>, vector<64x128xbf16>, vector<64x128xbf16>, vector<64x128xbf16>, vector<64x128xbf16>, vector<64x128xbf16> -> vector<64x1152xbf16>
    %c0_97 = arith.constant 0 : index
    %c0_98 = arith.constant 0 : index
    %77 = vector.load %arg5[%c0_97, %c0_98] : memref<1152x128xbf16, #tpu.memory_space<vmem>>, vector<1152x128xbf16>
    %cst_99 = arith.constant dense<0.000000e+00> : vector<64x128xf32>
    %78 = tpu.matmul %76, %77, %cst_99 {dimension_numbers = #tpu.dot_dimension_numbers<[1], [0], [0], [1], [0, 0, 1, 1], [], []>} : vector<64x1152xbf16>, vector<1152x128xbf16>, vector<64x128xf32> -> vector<64x128xf32>
    %c0_100 = arith.constant 0 : index
    %c0_101 = arith.constant 0 : index
    %79 = vector.load %arg6[%c0_100, %c0_101] : memref<1x128xf32, #tpu.memory_space<vmem>>, vector<1x128xf32>
    %80 = vector.broadcast %79 : vector<1x128xf32> to vector<64x128xf32>
    %81 = arith.mulf %78, %80 : vector<64x128xf32>
    %c0_102 = arith.constant 0 : index
    %c0_103 = arith.constant 0 : index
    %82 = vector.load %arg7[%c0_102, %c0_103] : memref<1x128xf32, #tpu.memory_space<vmem>>, vector<1x128xf32>
    %83 = vector.broadcast %82 : vector<1x128xf32> to vector<64x128xf32>
    %84 = arith.addf %81, %83 : vector<64x128xf32>
    %cst_104 = arith.constant 0.000000e+00 : f32
    %85 = vector.broadcast %cst_104 : f32 to vector<64x128xf32>
    %86 = arith.maximumf %84, %85 : vector<64x128xf32>
    %87 = vector.shape_cast %86 : vector<64x128xf32> to vector<1x64x128xf32>
    %c0_105 = arith.constant 0 : index
    %c0_106 = arith.constant 0 : index
    %c0_107 = arith.constant 0 : index
    %88 = vector.load %arg8[%c0_105, %c0_106, %c0_107] : memref<1x64x128xf32, #tpu.memory_space<vmem>>, vector<1x64x128xf32>
    tpu.vector_store %arg8[%c0_105, %c0_106, %c0_107], %87 {strides = array<i32>} : memref<1x64x128xf32, #tpu.memory_space<vmem>>, vector<1x64x128xf32>,
    return
  }
  func.func @transform_0(%arg0: i32) -> (i32, i32, i32, i32, i32, i32) {
    %c0_i32 = arith.constant 0 : i32
    %c0_i32_0 = arith.constant 0 : i32
    %c0_i32_1 = arith.constant 0 : i32
    %c0_i32_2 = arith.constant 0 : i32
    %c0_i32_3 = arith.constant 0 : i32
    %c0_i32_4 = arith.constant 0 : i32
    return %arg0, %c0_i32, %c0_i32_0, %c0_i32_1, %c0_i32_2, %c0_i32_3 : i32, i32, i32, i32, i32, i32
  }
  func.func @transform_1(%arg0: i32) -> (i32, i32) {
    %c0_i32 = arith.constant 0 : i32
    %c0_i32_0 = arith.constant 0 : i32
    %c0_i32_1 = arith.constant 0 : i32
    return %c0_i32, %c0_i32_0 : i32, i32
  }
  func.func @transform_2(%arg0: i32) -> (i32, i32) {
    %c0_i32 = arith.constant 0 : i32
    %c0_i32_0 = arith.constant 0 : i32
    %c0_i32_1 = arith.constant 0 : i32
    return %c0_i32, %c0_i32_0 : i32, i32
  }
  func.func @transform_3(%arg0: i32) -> (i32, i32) {
    %c0_i32 = arith.constant 0 : i32
    %c0_i32_0 = arith.constant 0 : i32
    %c0_i32_1 = arith.constant 0 : i32
    return %c0_i32, %c0_i32_0 : i32, i32
  }
  func.func @transform_4(%arg0: i32) -> (i32, i32) {
    %c0_i32 = arith.constant 0 : i32
    %c0_i32_0 = arith.constant 0 : i32
    %c0_i32_1 = arith.constant 0 : i32
    return %c0_i32, %c0_i32_0 : i32, i32
  }
  func.func @transform_5(%arg0: i32) -> (i32, i32) {
    %c0_i32 = arith.constant 0 : i32
    %c0_i32_0 = arith.constant 0 : i32
    %c0_i32_1 = arith.constant 0 : i32
    return %c0_i32, %c0_i32_0 : i32, i32
  }
  func.func @transform_6(%arg0: i32) -> (i32, i32) {
    %c0_i32 = arith.constant 0 : i32
    %c0_i32_0 = arith.constant 0 : i32
    %c0_i32_1 = arith.constant 0 : i32
    return %c0_i32, %c0_i32_0 : i32, i32
  }
  func.func @transform_7(%arg0: i32) -> (i32, i32, i32) {
    %c0_i32 = arith.constant 0 : i32
    %c0_i32_0 = arith.constant 0 : i32
    %c0_i32_1 = arith.constant 0 : i32
    return %arg0, %c0_i32, %c0_i32_0 : i32, i32, i32
  }
}

</mosaic_0001>

<llo_original>
// kernel: encoder_block_yb_forward.1
$region0: #{encoder_block_yb_forward.1}
  #allocation0 [shape = 'u32[]', space=smem, size = 0x4, offset = 0x4, fixed_abs, tag = 'smem constant byte address 0x4 - core index']
  #allocation1 [shape = 'u32[72,128]{1,0:T(1,128)}', space=vmem, size = 0x9000, scoped, tag = 'internal scratch']
  #allocation2 [shape = 'bf16[10,10,4]{2,1,0:T(8,128)(2,1)}', space=vmem, size = 0xa000, scoped, tag = 'scratch operand']
  #allocation3 [shape = 'bf16[10,10,128]{2,1,0:T(8,128)(2,1)}', space=vmem, size = 0xa000, scoped, tag = 'scratch operand']
  %s0 = inlined_call_operand.vmem [shape: f32[2,2,2,8,8,4], index: 0, kind: input, shape index: {}]
  %s1 = inlined_call_operand.vmem [shape: bf16[36,128], index: 1, kind: input, shape index: {}]
  %s2 = inlined_call_operand.vmem [shape: f32[1,128], index: 2, kind: input, shape index: {}]
  %s3 = inlined_call_operand.vmem [shape: f32[1,128], index: 3, kind: input, shape index: {}]
  %s4 = inlined_call_operand.vmem [shape: bf16[1152,128], index: 4, kind: input, shape index: {}]
  %s5 = inlined_call_operand.vmem [shape: f32[1,128], index: 5, kind: input, shape index: {}]
  %s6 = inlined_call_operand.vmem [shape: f32[1,128], index: 6, kind: input, shape index: {}]
  %s7 = inlined_call_operand.vmem [shape: f32[2,64,128], index: 7, kind: output, shape index: {}]
  %s8 = sld [smem:[#allocation0]]
  $region61: #{encoder_block_yb_forward.1} parent=0
    _
  %s10 = ssub.s32 1, %s8
  %s11 = scalar_select 0, %s10, %s8
  loop: start=0, step=1, limit=4
  $region2: #{encoder_block_yb_forward.1} parent=0 // loop_pre_header
    _
  $region3: #{encoder_block_yb_forward.1} parent=0 // loop_header
    %s13 = sphi 0, %s17
    %p14 = scmp.ge.s32.totalorder %s13, 4
    %s23 = sphi 0, %s25
    %s26 = sphi 0, %s23
    %s27 = sphi 0, %s26
    %s43 = sphi 0, %s27
    %s47 = sphi 0, %s47
    %s49 = sphi 0, %s47
    %s50 = sphi 0, %s49
    %s64 = sphi 0, %s50
    %s68 = sphi 0, %s68
    %s70 = sphi 0, %s68
    %s71 = sphi 0, %s70
    %s85 = sphi 0, %s71
    %s89 = sphi 0, %s89
    %s91 = sphi 0, %s89
    %s92 = sphi 0, %s91
    %s106 = sphi 0, %s92
    %s110 = sphi 0, %s110
    %s112 = sphi 0, %s110
    %s113 = sphi 0, %s112
    %s127 = sphi 0, %s113
    %s131 = sphi 0, %s131
    %s133 = sphi 0, %s131
    %s134 = sphi 0, %s133
    %s148 = sphi 0, %s134
    %s152 = sphi 0, %s152
    %s154 = sphi 0, %s152
    %s155 = sphi 0, %s154
    %s169 = sphi 0, %s155
    %s175 = sphi 0, %s177
    %s178 = sphi 0, %s175
    %s179 = sphi 0, %s178
    %s195 = sphi 0, %s179
  $region4: #{encoder_block_yb_forward.1} parent=0 // loop_header_branch
    %16 = sbr.rel (%p14) target = $region8
  $region5: #{encoder_block_yb_forward.1} parent=0 // loop_body
    %s18 = ssub.s32 %s13, 1
    %s19 = ssub.s32 %s13, 2
    %s20 = sadd.s32 %s13, 1
    %s21 = ssub.s32 %s13, %s20
    %p22 = scmp.eq.s32.totalorder %s21, 0
    %s24 = sadd.s32 %s23, 1
    %s25 = scalar_select %p22, %s23, %s24
    %p28 = pneg %p22
    %p29 = scmp.eq.s32.totalorder %s13, 1
    %p30 = por %p28, %p29
    %p31 = scmp.ne.s32.totalorder %s23, %s26
    %p32 = scmp.eq.s32.totalorder %s13, 0
    %p33 = por %p31, %p32
    %p34 = scmp.ne.s32.totalorder %s23, %s26
    %p35 = scmp.eq.s32.totalorder %s18, 1
    %p36 = por %p34, %p35
    %p37 = scmp.ne.s32.totalorder %s26, %s27
    %p38 = scmp.eq.s32.totalorder %s18, 0
    %p39 = por %p37, %p38
    %p40 = scmp.ne.s32.totalorder %s26, %s27
    %p41 = scmp.eq.s32.totalorder %s19, 1
    %p42 = por %p40, %p41
    %p44 = scmp.ne.s32.totalorder %s27, %s43
    %p45 = scmp.eq.s32.totalorder %s19, 0
    %p46 = por %p44, %p45
    %s48 = sadd.s32 %s47, 1
    %p51 = scmp.eq.s32.totalorder %s13, 1
    %p52 = scmp.ne.s32.totalorder %s47, %s49
    %p53 = scmp.eq.s32.totalorder %s13, 0
    %p54 = por %p52, %p53
    %p55 = scmp.ne.s32.totalorder %s47, %s49
    %p56 = scmp.eq.s32.totalorder %s18, 1
    %p57 = por %p55, %p56
    %p58 = scmp.ne.s32.totalorder %s49, %s50
    %p59 = scmp.eq.s32.totalorder %s18, 0
    %p60 = por %p58, %p59
    %p61 = scmp.ne.s32.totalorder %s49, %s50
    %p62 = scmp.eq.s32.totalorder %s19, 1
    %p63 = por %p61, %p62
    %p65 = scmp.ne.s32.totalorder %s50, %s64
    %p66 = scmp.eq.s32.totalorder %s19, 0
    %p67 = por %p65, %p66
    %s69 = sadd.s32 %s68, 1
    %p72 = scmp.eq.s32.totalorder %s13, 1
    %p73 = scmp.ne.s32.totalorder %s68, %s70
    %p74 = scmp.eq.s32.totalorder %s13, 0
    %p75 = por %p73, %p74
    %p76 = scmp.ne.s32.totalorder %s68, %s70
    %p77 = scmp.eq.s32.totalorder %s18, 1
    %p78 = por %p76, %p77
    %p79 = scmp.ne.s32.totalorder %s70, %s71
    %p80 = scmp.eq.s32.totalorder %s18, 0
    %p81 = por %p79, %p80
    %p82 = scmp.ne.s32.totalorder %s70, %s71
    %p83 = scmp.eq.s32.totalorder %s19, 1
    %p84 = por %p82, %p83
    %p86 = scmp.ne.s32.totalorder %s71, %s85
    %p87 = scmp.eq.s32.totalorder %s19, 0
    %p88 = por %p86, %p87
    %s90 = sadd.s32 %s89, 1
    %p93 = scmp.eq.s32.totalorder %s13, 1
    %p94 = scmp.ne.s32.totalorder %s89, %s91
    %p95 = scmp.eq.s32.totalorder %s13, 0
    %p96 = por %p94, %p95
    %p97 = scmp.ne.s32.totalorder %s89, %s91
    %p98 = scmp.eq.s32.totalorder %s18, 1
    %p99 = por %p97, %p98
    %p100 = scmp.ne.s32.totalorder %s91, %s92
    %p101 = scmp.eq.s32.totalorder %s18, 0
    %p102 = por %p100, %p101
    %p103 = scmp.ne.s32.totalorder %s91, %s92
    %p104 = scmp.eq.s32.totalorder %s19, 1
    %p105 = por %p103, %p104
    %p107 = scmp.ne.s32.totalorder %s92, %s106
    %p108 = scmp.eq.s32.totalorder %s19, 0
    %p109 = por %p107, %p108
    %s111 = sadd.s32 %s110, 1
    %p114 = scmp.eq.s32.totalorder %s13, 1
    %p115 = scmp.ne.s32.totalorder %s110, %s112
    %p116 = scmp.eq.s32.totalorder %s13, 0
    %p117 = por %p115, %p116
    %p118 = scmp.ne.s32.totalorder %s110, %s112
    %p119 = scmp.eq.s32.totalorder %s18, 1
    %p120 = por %p118, %p119
    %p121 = scmp.ne.s32.totalorder %s112, %s113
    %p122 = scmp.eq.s32.totalorder %s18, 0
    %p123 = por %p121, %p122
    %p124 = scmp.ne.s32.totalorder %s112, %s113
    %p125 = scmp.eq.s32.totalorder %s19, 1
    %p126 = por %p124, %p125
    %p128 = scmp.ne.s32.totalorder %s113, %s127
    %p129 = scmp.eq.s32.totalorder %s19, 0
    %p130 = por %p128, %p129
    %s132 = sadd.s32 %s131, 1
    %p135 = scmp.eq.s32.totalorder %s13, 1
    %p136 = scmp.ne.s32.totalorder %s131, %s133
    %p137 = scmp.eq.s32.totalorder %s13, 0
    %p138 = por %p136, %p137
    %p139 = scmp.ne.s32.totalorder %s131, %s133
    %p140 = scmp.eq.s32.totalorder %s18, 1
    %p141 = por %p139, %p140
    %p142 = scmp.ne.s32.totalorder %s133, %s134
    %p143 = scmp.eq.s32.totalorder %s18, 0
    %p144 = por %p142, %p143
    %p145 = scmp.ne.s32.totalorder %s133, %s134
    %p146 = scmp.eq.s32.totalorder %s19, 1
    %p147 = por %p145, %p146
    %p149 = scmp.ne.s32.totalorder %s134, %s148
    %p150 = scmp.eq.s32.totalorder %s19, 0
    %p151 = por %p149, %p150
    %s153 = sadd.s32 %s152, 1
    %p156 = scmp.eq.s32.totalorder %s13, 1
    %p157 = scmp.ne.s32.totalorder %s152, %s154
    %p158 = scmp.eq.s32.totalorder %s13, 0
    %p159 = por %p157, %p158
    %p160 = scmp.ne.s32.totalorder %s152, %s154
    %p161 = scmp.eq.s32.totalorder %s18, 1
    %p162 = por %p160, %p161
    %p163 = scmp.ne.s32.totalorder %s154, %s155
    %p164 = scmp.eq.s32.totalorder %s18, 0
    %p165 = por %p163, %p164
    %p166 = scmp.ne.s32.totalorder %s154, %s155
    %p167 = scmp.eq.s32.totalorder %s19, 1
    %p168 = por %p166, %p167
    %p170 = scmp.ne.s32.totalorder %s155, %s169
    %p171 = scmp.eq.s32.totalorder %s19, 0
    %p172 = por %p170, %p171
    %s173 = ssub.s32 %s13, %s20
    %p174 = scmp.eq.s32.totalorder %s173, 0
    %s176 = sadd.s32 %s175, 1
    %s177 = scalar_select %p174, %s175, %s176
    %p180 = pneg %p174
    %p181 = scmp.eq.s32.totalorder %s13, 1
    %p182 = por %p180, %p181
    %p183 = scmp.ne.s32.totalorder %s175, %s178
    %p184 = scmp.eq.s32.totalorder %s13, 0
    %p185 = por %p183, %p184
    %p186 = scmp.ne.s32.totalorder %s175, %s178
    %p187 = scmp.eq.s32.totalorder %s18, 1
    %p188 = por %p186, %p187
    %p189 = scmp.ne.s32.totalorder %s178, %s179
    %p190 = scmp.eq.s32.totalorder %s18, 0
    %p191 = por %p189, %p190
    %p192 = scmp.ne.s32.totalorder %s178, %s179
    %p193 = scmp.eq.s32.totalorder %s19, 1
    %p194 = por %p192, %p193
    %p196 = scmp.ne.s32.totalorder %s179, %s195
    %p197 = scmp.eq.s32.totalorder %s19, 0
    %p198 = por %p196, %p197
    %p199 = scmp.le.s32.totalorder 1, %s13
    %p200 = scmp.lt.s32.totalorder %s13, 3
    %p201 = pnand %p199, %p200
    %p202 = pneg %p201
    // Predicated region
    $region9: #{encoder_block_yb_forward.1} parent=5 // pred_check
      _
    $region10: #{encoder_block_yb_forward.1} parent=5 // pred_check_branch
      %204 = sbr.rel (%p201) target = $region12
    $region11: #{encoder_block_yb_forward.1} parent=5 // pred_region
      %s205 = ssub.s32 %s13, 1
      // Predicated region
      $region13: #{encoder_block_yb_forward.1} parent=11 // pred_check
        %p206 = pneg %p60
      $region14: #{encoder_block_yb_forward.1} parent=11 // pred_check_branch
        %208 = sbr.rel (%p206) target = $region16
      $region15: #{encoder_block_yb_forward.1} parent=11 // pred_region
        _
      $region16: #{encoder_block_yb_forward.1} parent=11 // pred_fallthru
        _
      // Predicated region
      $region17: #{encoder_block_yb_forward.1} parent=11 // pred_check
        %p209 = pneg %p81
      $region18: #{encoder_block_yb_forward.1} parent=11 // pred_check_branch
        %211 = sbr.rel (%p209) target = $region20
      $region19: #{encoder_block_yb_forward.1} parent=11 // pred_region
        _
      $region20: #{encoder_block_yb_forward.1} parent=11 // pred_fallthru
        _
      // Predicated region
      $region21: #{encoder_block_yb_forward.1} parent=11 // pred_check
        %p212 = pneg %p102
      $region22: #{encoder_block_yb_forward.1} parent=11 // pred_check_branch
        %214 = sbr.rel (%p212) target = $region24
      $region23: #{encoder_block_yb_forward.1} parent=11 // pred_region
        _
      $region24: #{encoder_block_yb_forward.1} parent=11 // pred_fallthru
        _
      // Predicated region
      $region25: #{encoder_block_yb_forward.1} parent=11 // pred_check
        %p215 = pneg %p123
      $region26: #{encoder_block_yb_forward.1} parent=11 // pred_check_branch
        %217 = sbr.rel (%p215) target = $region28
      $region27: #{encoder_block_yb_forward.1} parent=11 // pred_region
        _
      $region28: #{encoder_block_yb_forward.1} parent=11 // pred_fallthru
        _
      // Predicated region
      $region29: #{encoder_block_yb_forward.1} parent=11 // pred_check
        %p218 = pneg %p144
      $region30: #{encoder_block_yb_forward.1} parent=11 // pred_check_branch
        %220 = sbr.rel (%p218) target = $region32
      $region31: #{encoder_block_yb_forward.1} parent=11 // pred_region
        _
      $region32: #{encoder_block_yb_forward.1} parent=11 // pred_fallthru
        _
      // Predicated region
      $region33: #{encoder_block_yb_forward.1} parent=11 // pred_check
        %p221 = pneg %p165
      $region34: #{encoder_block_yb_forward.1} parent=11 // pred_check_branch
        %223 = sbr.rel (%p221) target = $region36
      $region35: #{encoder_block_yb_forward.1} parent=11 // pred_region
        _
      $region36: #{encoder_block_yb_forward.1} parent=11 // pred_fallthru
        _
    $region12: #{encoder_block_yb_forward.1} parent=5 // pred_fallthru
      _
    %p224 = scmp.lt.s32.totalorder %s13, 2
    // Predicated region
    $region37: #{encoder_block_yb_forward.1} parent=5 // pred_check
      %p225 = pneg %p224
    $region38: #{encoder_block_yb_forward.1} parent=5 // pred_check_branch
      %227 = sbr.rel (%p225) target = $region40
    $region39: #{encoder_block_yb_forward.1} parent=5 // pred_region
      // Predicated region
      $region41: #{encoder_block_yb_forward.1} parent=39 // pred_check
        %p228 = pneg %p33
      $region42: #{encoder_block_yb_forward.1} parent=39 // pred_check_branch
        %230 = sbr.rel (%p228) target = $region44
      $region43: #{encoder_block_yb_forward.1} parent=39 // pred_region
        %p231 = scmp.lt.s32.totalorder %s13, 1
        %s232 = scalar_select %p231, %s13, 1
        %s233 = smul.addr %s232, 32
        %s234 = smul.addr %s233, 8
        %s235 = scalar_lea.vmem %s0, %s234
      $region44: #{encoder_block_yb_forward.1} parent=39 // pred_fallthru
        _
    $region40: #{encoder_block_yb_forward.1} parent=5 // pred_fallthru
      _
    %p236 = scmp.le.s32.totalorder 1, %s13
    %p237 = scmp.lt.s32.totalorder %s13, 3
    %p238 = pnand %p236, %p237
    %p239 = pneg %p238
    // Predicated region
    $region45: #{encoder_block_yb_forward.1} parent=5 // pred_check
      _
    $region46: #{encoder_block_yb_forward.1} parent=5 // pred_check_branch
      %241 = sbr.rel (%p238) target = $region48
    $region47: #{encoder_block_yb_forward.1} parent=5 // pred_region
      %s242 = ssub.s32 %s13, 1
      %p243 = scmp.lt.s32.totalorder %s18, 1
      %s244 = scalar_select %p243, %s18, 1
      %s245 = smul.addr %s244, 32
      %s246 = smul.addr %s245, 8
      %s247 = scalar_lea.vmem %s0, %s246
      %p248 = pneg %p39
      %p249 = pneg %p36
      %p250 = pneg %p60
      %p251 = pneg %p57
      %p252 = pneg %p81
      %p253 = pneg %p78
      %p254 = pneg %p102
      %p255 = pneg %p99
      %p256 = pneg %p123
      %p257 = pneg %p120
      %p258 = pneg %p144
      %p259 = pneg %p141
      %p260 = pneg %p165
      %p261 = pneg %p162
      %p262 = pneg %p191
      %p263 = pneg %p188
      %p264 = scmp.lt.s32.totalorder %s18, 1
      %s265 = scalar_select %p264, %s18, 1
      %s266 = smul.addr %s265, 8
      %s267 = smul.addr %s266, 8
      %s268 = scalar_lea.vmem %s7, %s267
      %p269 = scmp.lt.s32.totalorder %s18, 1
      %s270 = scalar_select %p269, %s18, 1
      %s271 = smul.addr %s270, 32
      %s272 = smul.addr %s271, 8
      %s273 = scalar_lea.vmem %s0, %s272
      %p274 = scmp.lt.s32.totalorder %s18, 1
      %s275 = scalar_select %p274, %s18, 1
      %s276 = smul.addr %s275, 8
      %s277 = smul.addr %s276, 8
      %s278 = scalar_lea.vmem %s7, %s277
      %vm280 = vcmask 27648
      %281 = vst.msk [vmem:[#allocation2] sm:$0xf] %vm280, 0
      %vm282 = vcmask 24576
      %283 = vst.msk [vmem:[#allocation2 + $0x4] sm:$0x1] %vm282, 0
      %s284 = scalar_lea.vmem [#allocation2], 72
      %285 = vst.msk [vmem:[%s284] sm:$0xf] %vm280, 0
      %286 = vst.msk [vmem:[%s284 + $0x4] sm:$0x1] %vm282, 0
      %vm287 = vcmask 24576
      %vm288 = vsmask.f32 256
      %vm289 = vmand %vm287, %vm288
      %v290 = vld [vmem:[#allocation2] sm:$0x1]
      %v291 = vsel %vm289, 0, %v290
      %292 = vst [vmem:[#allocation2] sm:$0x1] %v291
      %v293 = vld [vmem:[#allocation2 + $0x8] sm:$0x1]
      %v294 = vsel %vm289, 0, %v293
      %295 = vst [vmem:[#allocation2 + $0x8] sm:$0x1] %v294
      %v296 = vld [vmem:[#allocation2 + $0x10] sm:$0x1]
      %v297 = vsel %vm289, 0, %v296
      %298 = vst [vmem:[#allocation2 + $0x10] sm:$0x1] %v297
      %v299 = vld [vmem:[#allocation2 + $0x18] sm:$0x1]
      %v300 = vsel %vm289, 0, %v299
      %301 = vst [vmem:[#allocation2 + $0x18] sm:$0x1] %v300
      %v302 = vld [vmem:[#allocation2 + $0x20] sm:$0x1]
      %v303 = vsel %vm289, 0, %v302
      %304 = vst [vmem:[#allocation2 + $0x20] sm:$0x1] %v303
      %v305 = vld [vmem:[#allocation2 + $0x28] sm:$0x1]
      %v306 = vsel %vm289, 0, %v305
      %307 = vst [vmem:[#allocation2 + $0x28] sm:$0x1] %v306
      %v308 = vld [vmem:[#allocation2 + $0x30] sm:$0x1]
      %v309 = vsel %vm289, 0, %v308
      %310 = vst [vmem:[#allocation2 + $0x30] sm:$0x1] %v309
      %v311 = vld [vmem:[#allocation2 + $0x38] sm:$0x1]
      %v312 = vsel %vm289, 0, %v311
      %313 = vst [vmem:[#allocation2 + $0x38] sm:$0x1] %v312
      %v314 = vld [vmem:[#allocation2 + $0x40] sm:$0x1]
      %v315 = vsel %vm289, 0, %v314
      %316 = vst [vmem:[#allocation2 + $0x40] sm:$0x1] %v315
      %v317 = vld [vmem:[#allocation2 + $0x48] sm:$0x1]
      %v318 = vsel %vm289, 0, %v317
      %319 = vst [vmem:[#allocation2 + $0x48] sm:$0x1] %v318
      %vm320 = vsmask.f32 7938
      %vm321 = vmand %vm287, %vm320
      %v322 = vld [vmem:[#allocation2 + $0x4] sm:$0x1]
      %v323 = vsel %vm321, 0, %v322
      %324 = vst [vmem:[#allocation2 + $0x4] sm:$0x1] %v323
      %v325 = vld [vmem:[#allocation2 + $0xc] sm:$0x1]
      %v326 = vsel %vm321, 0, %v325
      %327 = vst [vmem:[#allocation2 + $0xc] sm:$0x1] %v326
      %v328 = vld [vmem:[#allocation2 + $0x14] sm:$0x1]
      %v329 = vsel %vm321, 0, %v328
      %330 = vst [vmem:[#allocation2 + $0x14] sm:$0x1] %v329
      %v331 = vld [vmem:[#allocation2 + $0x1c] sm:$0x1]
      %v332 = vsel %vm321, 0, %v331
      %333 = vst [vmem:[#allocation2 + $0x1c] sm:$0x1] %v332
      %v334 = vld [vmem:[#allocation2 + $0x24] sm:$0x1]
      %v335 = vsel %vm321, 0, %v334
      %336 = vst [vmem:[#allocation2 + $0x24] sm:$0x1] %v335
      %v337 = vld [vmem:[#allocation2 + $0x2c] sm:$0x1]
      %v338 = vsel %vm321, 0, %v337
      %339 = vst [vmem:[#allocation2 + $0x2c] sm:$0x1] %v338
      %v340 = vld [vmem:[#allocation2 + $0x34] sm:$0x1]
      %v341 = vsel %vm321, 0, %v340
      %342 = vst [vmem:[#allocation2 + $0x34] sm:$0x1] %v341
      %v343 = vld [vmem:[#allocation2 + $0x3c] sm:$0x1]
      %v344 = vsel %vm321, 0, %v343
      %345 = vst [vmem:[#allocation2 + $0x3c] sm:$0x1] %v344
      %v346 = vld [vmem:[#allocation2 + $0x44] sm:$0x1]
      %v347 = vsel %vm321, 0, %v346
      %348 = vst [vmem:[#allocation2 + $0x44] sm:$0x1] %v347
      %v349 = vld [vmem:[#allocation2 + $0x4c] sm:$0x1]
      %v350 = vsel %vm321, 0, %v349
      %351 = vst [vmem:[#allocation2 + $0x4c] sm:$0x1] %v350
      %352 = vst [vmem:[#allocation3] sm:$0xf] 0
      %353 = vst [vmem:[#allocation3 + $0x4] sm:$0x1] 0
      %s354 = scalar_lea.vmem [#allocation3], 72
      %355 = vst [vmem:[%s354] sm:$0xf] 0
      %356 = vst [vmem:[%s354 + $0x4] sm:$0x1] 0
      %vm357 = vcmask 1040384
      %vm358 = vmand %vm357, %vm288
      %v359 = vld [vmem:[#allocation3] sm:$0x1]
      %v360 = vsel %vm358, 0, %v359
      %361 = vst [vmem:[#allocation3] sm:$0x1] %v360
      %v362 = vld [vmem:[#allocation3 + $0x8] sm:$0x1]
      %v363 = vsel %vm358, 0, %v362
      %364 = vst [vmem:[#allocation3 + $0x8] sm:$0x1] %v363
      %v365 = vld [vmem:[#allocation3 + $0x10] sm:$0x1]
      %v366 = vsel %vm358, 0, %v365
      %367 = vst [vmem:[#allocation3 + $0x10] sm:$0x1] %v366
      %v368 = vld [vmem:[#allocation3 + $0x18] sm:$0x1]
      %v369 = vsel %vm358, 0, %v368
      %370 = vst [vmem:[#allocation3 + $0x18] sm:$0x1] %v369
      %v371 = vld [vmem:[#allocation3 + $0x20] sm:$0x1]
      %v372 = vsel %vm358, 0, %v371
      %373 = vst [vmem:[#allocation3 + $0x20] sm:$0x1] %v372
      %v374 = vld [vmem:[#allocation3 + $0x28] sm:$0x1]
      %v375 = vsel %vm358, 0, %v374
      %376 = vst [vmem:[#allocation3 + $0x28] sm:$0x1] %v375
      %v377 = vld [vmem:[#allocation3 + $0x30] sm:$0x1]
      %v378 = vsel %vm358, 0, %v377
      %379 = vst [vmem:[#allocation3 + $0x30] sm:$0x1] %v378
      %v380 = vld [vmem:[#allocation3 + $0x38] sm:$0x1]
      %v381 = vsel %vm358, 0, %v380
      %382 = vst [vmem:[#allocation3 + $0x38] sm:$0x1] %v381
      %v383 = vld [vmem:[#allocation3 + $0x40] sm:$0x1]
      %v384 = vsel %vm358, 0, %v383
      %385 = vst [vmem:[#allocation3 + $0x40] sm:$0x1] %v384
      %v386 = vld [vmem:[#allocation3 + $0x48] sm:$0x1]
      %v387 = vsel %vm358, 0, %v386
      %388 = vst [vmem:[#allocation3 + $0x48] sm:$0x1] %v387
      %vm389 = vmand %vm357, %vm320
      %v390 = vld [vmem:[#allocation3 + $0x4] sm:$0x1]
      %v391 = vsel %vm389, 0, %v390
      %392 = vst [vmem:[#allocation3 + $0x4] sm:$0x1] %v391
      %v393 = vld [vmem:[#allocation3 + $0xc] sm:$0x1]
      %v394 = vsel %vm389, 0, %v393
      %395 = vst [vmem:[#allocation3 + $0xc] sm:$0x1] %v394
      %v396 = vld [vmem:[#allocation3 + $0x14] sm:$0x1]
      %v397 = vsel %vm389, 0, %v396
      %398 = vst [vmem:[#allocation3 + $0x14] sm:$0x1] %v397
      %v399 = vld [vmem:[#allocation3 + $0x1c] sm:$0x1]
      %v400 = vsel %vm389, 0, %v399
      %401 = vst [vmem:[#allocation3 + $0x1c] sm:$0x1] %v400
      %v402 = vld [vmem:[#allocation3 + $0x24] sm:$0x1]
      %v403 = vsel %vm389, 0, %v402
      %404 = vst [vmem:[#allocation3 + $0x24] sm:$0x1] %v403
      %v405 = vld [vmem:[#allocation3 + $0x2c] sm:$0x1]
      %v406 = vsel %vm389, 0, %v405
      %407 = vst [vmem:[#allocation3 + $0x2c] sm:$0x1] %v406
      %v408 = vld [vmem:[#allocation3 + $0x34] sm:$0x1]
      %v409 = vsel %vm389, 0, %v408
      %410 = vst [vmem:[#allocation3 + $0x34] sm:$0x1] %v409
      %v411 = vld [vmem:[#allocation3 + $0x3c] sm:$0x1]
      %v412 = vsel %vm389, 0, %v411
      %413 = vst [vmem:[#allocation3 + $0x3c] sm:$0x1] %v412
      %v414 = vld [vmem:[#allocation3 + $0x44] sm:$0x1]
      %v415 = vsel %vm389, 0, %v414
      %416 = vst [vmem:[#allocation3 + $0x44] sm:$0x1] %v415
      %v417 = vld [vmem:[#allocation3 + $0x4c] sm:$0x1]
      %v418 = vsel %vm389, 0, %v417
      %419 = vst [vmem:[#allocation3 + $0x4c] sm:$0x1] %v418
      %v420 = vld [vmem:[%s273] sm:$0xff]
      %v421 = vld [vmem:[%s273 + $0x8] sm:$0xff]
      %v422 = vld [vmem:[%s273 + $0x10] sm:$0xff]
      %v423 = vld [vmem:[%s273 + $0x18] sm:$0xff]
      %v424 = vld [vmem:[%s273 + $0x20] sm:$0xff]
      %v425 = vld [vmem:[%s273 + $0x28] sm:$0xff]
      %v426 = vld [vmem:[%s273 + $0x30] sm:$0xff]
      %v427 = vld [vmem:[%s273 + $0x38] sm:$0xff]
      %v428 = vld [vmem:[%s273 + $0x40] sm:$0xff]
      %v429 = vld [vmem:[%s273 + $0x48] sm:$0xff]
      %v430 = vld [vmem:[%s273 + $0x50] sm:$0xff]
      %v431 = vld [vmem:[%s273 + $0x58] sm:$0xff]
      %v432 = vld [vmem:[%s273 + $0x60] sm:$0xff]
      %v433 = vld [vmem:[%s273 + $0x68] sm:$0xff]
      %v434 = vld [vmem:[%s273 + $0x70] sm:$0xff]
      %v435 = vld [vmem:[%s273 + $0x78] sm:$0xff]
      %v436 = vld [vmem:[%s273 + $0x80] sm:$0xff]
      %v437 = vld [vmem:[%s273 + $0x88] sm:$0xff]
      %v438 = vld [vmem:[%s273 + $0x90] sm:$0xff]
      %v439 = vld [vmem:[%s273 + $0x98] sm:$0xff]
      %v440 = vld [vmem:[%s273 + $0xa0] sm:$0xff]
      %v441 = vld [vmem:[%s273 + $0xa8] sm:$0xff]
      %v442 = vld [vmem:[%s273 + $0xb0] sm:$0xff]
      %v443 = vld [vmem:[%s273 + $0xb8] sm:$0xff]
      %v444 = vld [vmem:[%s273 + $0xc0] sm:$0xff]
      %v445 = vld [vmem:[%s273 + $0xc8] sm:$0xff]
      %v446 = vld [vmem:[%s273 + $0xd0] sm:$0xff]
      %v447 = vld [vmem:[%s273 + $0xd8] sm:$0xff]
      %v448 = vld [vmem:[%s273 + $0xe0] sm:$0xff]
      %v449 = vld [vmem:[%s273 + $0xe8] sm:$0xff]
      %v450 = vld [vmem:[%s273 + $0xf0] sm:$0xff]
      %v451 = vld [vmem:[%s273 + $0xf8] sm:$0xff]
      %v452 = vmax.f32 %v420, %v428
      %v453 = vmax.f32 %v421, %v429
      %v454 = vmax.f32 %v422, %v430
      %v455 = vmax.f32 %v423, %v431
      %v456 = vmax.f32 %v424, %v432
      %v457 = vmax.f32 %v425, %v433
      %v458 = vmax.f32 %v426, %v434
      %v459 = vmax.f32 %v427, %v435
      %v460 = vmax.f32 %v436, %v444
      %v461 = vmax.f32 %v437, %v445
      %v462 = vmax.f32 %v438, %v446
      %v463 = vmax.f32 %v439, %v447
      %v464 = vmax.f32 %v440, %v448
      %v465 = vmax.f32 %v441, %v449
      %v466 = vmax.f32 %v442, %v450
      %v467 = vmax.f32 %v443, %v451
      %v468 = vmax.f32 %v452, %v460
      %v469 = vmax.f32 %v453, %v461
      %v470 = vmax.f32 %v454, %v462
      %v471 = vmax.f32 %v455, %v463
      %v472 = vmax.f32 %v456, %v464
      %v473 = vmax.f32 %v457, %v465
      %v474 = vmax.f32 %v458, %v466
      %v475 = vmax.f32 %v459, %v467
      %v476 = vpack.c.bf16 %v468, %v468
      %v477 = vpack.c.bf16 %v469, %v469
      %v478 = vpack.c.bf16 %v470, %v470
      %v479 = vpack.c.bf16 %v471, %v471
      %v480 = vpack.c.bf16 %v472, %v472
      %v481 = vpack.c.bf16 %v473, %v473
      %v482 = vpack.c.bf16 %v474, %v474
      %v483 = vpack.c.bf16 %v475, %v475
      %v485 = vshrl.u32 %v476, 16
      %v487 = vrot.slane %v485, 7
      %v488 = vshll.u32 %v476, 16
      %v490 = vor.u32 %v487, %v488
      %v491 = vrot.slane %v487, 4
      %v493 = vshrl.u32 %v477, 16
      %v495 = vrot.slane %v493, 7
      %v496 = vshll.u32 %v477, 16
      %v498 = vor.u32 %v495, %v496
      %v499 = vrot.slane %v495, 4
      %v501 = vshrl.u32 %v478, 16
      %v503 = vrot.slane %v501, 7
      %v504 = vshll.u32 %v478, 16
      %v506 = vor.u32 %v503, %v504
      %v507 = vrot.slane %v503, 4
      %v509 = vshrl.u32 %v479, 16
      %v511 = vrot.slane %v509, 7
      %v512 = vshll.u32 %v479, 16
      %v514 = vor.u32 %v511, %v512
      %v515 = vrot.slane %v511, 4
      %v517 = vshrl.u32 %v480, 16
      %v519 = vrot.slane %v517, 7
      %v520 = vshll.u32 %v480, 16
      %v522 = vor.u32 %v519, %v520
      %v523 = vrot.slane %v519, 4
      %v525 = vshrl.u32 %v481, 16
      %v527 = vrot.slane %v525, 7
      %v528 = vshll.u32 %v481, 16
      %v530 = vor.u32 %v527, %v528
      %v531 = vrot.slane %v527, 4
      %v533 = vshrl.u32 %v482, 16
      %v535 = vrot.slane %v533, 7
      %v536 = vshll.u32 %v482, 16
      %v538 = vor.u32 %v535, %v536
      %v539 = vrot.slane %v535, 4
      %v541 = vshrl.u32 %v483, 16
      %v543 = vrot.slane %v541, 7
      %v544 = vshll.u32 %v483, 16
      %v546 = vor.u32 %v543, %v544
      %v547 = vrot.slane %v543, 4
      %s564 = scalar_lea.vmem [#allocation2], 8
      %vm565 = vcmask 27648
      %vm566 = vmand %vm565, %vm320
      %v567 = vld [vmem:[%s564] sm:$0xf]
      %v568 = vsel %vm566, %v490, %v567
      %569 = vst [vmem:[%s564] sm:$0xf] %v568
      %v570 = vld [vmem:[%s564 + $0x4] sm:$0x1]
      %v571 = vsel %vm289, %v491, %v570
      %572 = vst [vmem:[%s564 + $0x4] sm:$0x1] %v571
      %v573 = vld [vmem:[%s564 + $0x8] sm:$0xf]
      %v574 = vsel %vm566, %v498, %v573
      %575 = vst [vmem:[%s564 + $0x8] sm:$0xf] %v574
      %v576 = vld [vmem:[%s564 + $0xc] sm:$0x1]
      %v577 = vsel %vm289, %v499, %v576
      %578 = vst [vmem:[%s564 + $0xc] sm:$0x1] %v577
      %v579 = vld [vmem:[%s564 + $0x10] sm:$0xf]
      %v580 = vsel %vm566, %v506, %v579
      %581 = vst [vmem:[%s564 + $0x10] sm:$0xf] %v580
      %v582 = vld [vmem:[%s564 + $0x14] sm:$0x1]
      %v583 = vsel %vm289, %v507, %v582
      %584 = vst [vmem:[%s564 + $0x14] sm:$0x1] %v583
      %v585 = vld [vmem:[%s564 + $0x18] sm:$0xf]
      %v586 = vsel %vm566, %v514, %v585
      %587 = vst [vmem:[%s564 + $0x18] sm:$0xf] %v586
      %v588 = vld [vmem:[%s564 + $0x1c] sm:$0x1]
      %v589 = vsel %vm289, %v515, %v588
      %590 = vst [vmem:[%s564 + $0x1c] sm:$0x1] %v589
      %v591 = vld [vmem:[%s564 + $0x20] sm:$0xf]
      %v592 = vsel %vm566, %v522, %v591
      %593 = vst [vmem:[%s564 + $0x20] sm:$0xf] %v592
      %v594 = vld [vmem:[%s564 + $0x24] sm:$0x1]
      %v595 = vsel %vm289, %v523, %v594
      %596 = vst [vmem:[%s564 + $0x24] sm:$0x1] %v595
      %v597 = vld [vmem:[%s564 + $0x28] sm:$0xf]
      %v598 = vsel %vm566, %v530, %v597
      %599 = vst [vmem:[%s564 + $0x28] sm:$0xf] %v598
      %v600 = vld [vmem:[%s564 + $0x2c] sm:$0x1]
      %v601 = vsel %vm289, %v531, %v600
      %602 = vst [vmem:[%s564 + $0x2c] sm:$0x1] %v601
      %v603 = vld [vmem:[%s564 + $0x30] sm:$0xf]
      %v604 = vsel %vm566, %v538, %v603
      %605 = vst [vmem:[%s564 + $0x30] sm:$0xf] %v604
      %v606 = vld [vmem:[%s564 + $0x34] sm:$0x1]
      %v607 = vsel %vm289, %v539, %v606
      %608 = vst [vmem:[%s564 + $0x34] sm:$0x1] %v607
      %v609 = vld [vmem:[%s564 + $0x38] sm:$0xf]
      %v610 = vsel %vm566, %v546, %v609
      %611 = vst [vmem:[%s564 + $0x38] sm:$0xf] %v610
      %v612 = vld [vmem:[%s564 + $0x3c] sm:$0x1]
      %v613 = vsel %vm289, %v547, %v612
      %614 = vst [vmem:[%s564 + $0x3c] sm:$0x1] %v613
      %v615 = vld [vmem:[#allocation2] sm:$0xf]
      %v616 = vld [vmem:[#allocation2 + $0x8] sm:$0xf]
      %v617 = vld [vmem:[#allocation2 + $0x10] sm:$0xf]
      %v618 = vld [vmem:[#allocation2 + $0x18] sm:$0xf]
      %v619 = vld [vmem:[#allocation2 + $0x20] sm:$0xf]
      %v620 = vld [vmem:[#allocation2 + $0x28] sm:$0xf]
      %v621 = vld [vmem:[#allocation2 + $0x30] sm:$0xf]
      %v622 = vld [vmem:[#allocation2 + $0x38] sm:$0xf]
      %v623 = vld [vmem:[#allocation2 + $0x4] sm:$0x1]
      %v624 = vld [vmem:[#allocation2 + $0xc] sm:$0x1]
      %v625 = vld [vmem:[#allocation2 + $0x14] sm:$0x1]
      %v626 = vld [vmem:[#allocation2 + $0x1c] sm:$0x1]
      %v627 = vld [vmem:[#allocation2 + $0x24] sm:$0x1]
      %v628 = vld [vmem:[#allocation2 + $0x2c] sm:$0x1]
      %v629 = vld [vmem:[#allocation2 + $0x34] sm:$0x1]
      %v630 = vld [vmem:[#allocation2 + $0x3c] sm:$0x1]
      %vm631 = vsmask.f32 3328
      %vm632 = vsmask.f32 7440
      %vm633 = vmor %vm631, %vm632
      %v635 = vshrl.u32 %v615, 16
      %v637 = vrot.slane %v635, 4
      %v638 = vshll.u32 %v615, 16
      %v640 = vrot.slane %v638, 5
      %v641 = vor.u32 %v637, %v640
      %v642 = vrot.slane %v641, 4
      %v644 = vshll.u32 %v623, 16
      %v646 = vrot.slane %v644, 5
      %v647 = vsel %vm633, %v642, %v646
      %v649 = vshrl.u32 %v616, 16
      %v651 = vrot.slane %v649, 4
      %v652 = vshll.u32 %v616, 16
      %v654 = vrot.slane %v652, 5
      %v655 = vor.u32 %v651, %v654
      %v656 = vrot.slane %v655, 4
      %v658 = vshll.u32 %v624, 16
      %v660 = vrot.slane %v658, 5
      %v661 = vsel %vm633, %v656, %v660
      %v663 = vshrl.u32 %v617, 16
      %v665 = vrot.slane %v663, 4
      %v666 = vshll.u32 %v617, 16
      %v668 = vrot.slane %v666, 5
      %v669 = vor.u32 %v665, %v668
      %v670 = vrot.slane %v669, 4
      %v672 = vshll.u32 %v625, 16
      %v674 = vrot.slane %v672, 5
      %v675 = vsel %vm633, %v670, %v674
      %v677 = vshrl.u32 %v618, 16
      %v679 = vrot.slane %v677, 4
      %v680 = vshll.u32 %v618, 16
      %v682 = vrot.slane %v680, 5
      %v683 = vor.u32 %v679, %v682
      %v684 = vrot.slane %v683, 4
      %v686 = vshll.u32 %v626, 16
      %v688 = vrot.slane %v686, 5
      %v689 = vsel %vm633, %v684, %v688
      %v691 = vshrl.u32 %v619, 16
      %v693 = vrot.slane %v691, 4
      %v694 = vshll.u32 %v619, 16
      %v696 = vrot.slane %v694, 5
      %v697 = vor.u32 %v693, %v696
      %v698 = vrot.slane %v697, 4
      %v700 = vshll.u32 %v627, 16
      %v702 = vrot.slane %v700, 5
      %v703 = vsel %vm633, %v698, %v702
      %v705 = vshrl.u32 %v620, 16
      %v707 = vrot.slane %v705, 4
      %v708 = vshll.u32 %v620, 16
      %v710 = vrot.slane %v708, 5
      %v711 = vor.u32 %v707, %v710
      %v712 = vrot.slane %v711, 4
      %v714 = vshll.u32 %v628, 16
      %v716 = vrot.slane %v714, 5
      %v717 = vsel %vm633, %v712, %v716
      %v719 = vshrl.u32 %v621, 16
      %v721 = vrot.slane %v719, 4
      %v722 = vshll.u32 %v621, 16
      %v724 = vrot.slane %v722, 5
      %v725 = vor.u32 %v721, %v724
      %v726 = vrot.slane %v725, 4
      %v728 = vshll.u32 %v629, 16
      %v730 = vrot.slane %v728, 5
      %v731 = vsel %vm633, %v726, %v730
      %v733 = vshrl.u32 %v622, 16
      %v735 = vrot.slane %v733, 4
      %v736 = vshll.u32 %v622, 16
      %v738 = vrot.slane %v736, 5
      %v739 = vor.u32 %v735, %v738
      %v740 = vrot.slane %v739, 4
      %v742 = vshll.u32 %v630, 16
      %v744 = vrot.slane %v742, 5
      %v745 = vsel %vm633, %v740, %v744
      %v746 = vld [vmem:[#allocation2] sm:$0xe]
      %v747 = vld [vmem:[#allocation2 + $0x8] sm:$0xe]
      %v748 = vld [vmem:[#allocation2 + $0x10] sm:$0xe]
      %v749 = vld [vmem:[#allocation2 + $0x18] sm:$0xe]
      %v750 = vld [vmem:[#allocation2 + $0x20] sm:$0xe]
      %v751 = vld [vmem:[#allocation2 + $0x28] sm:$0xe]
      %v752 = vld [vmem:[#allocation2 + $0x30] sm:$0xe]
      %v753 = vld [vmem:[#allocation2 + $0x38] sm:$0xe]
      %vm770 = vcmask 1042432
      %vm771 = vcmask 1046532
      %vm772 = vmor %vm770, %vm771
      %v773 = vrot.slane %v746, 5
      %v774 = vrot.slane %v773, 4
      %v775 = vrot.slane %v623, 5
      %v776 = vsel %vm772, %v774, %v775
      %v777 = vrot.slane %v747, 5
      %v778 = vrot.slane %v777, 4
      %v779 = vrot.slane %v624, 5
      %v780 = vsel %vm772, %v778, %v779
      %v781 = vrot.slane %v748, 5
      %v782 = vrot.slane %v781, 4
      %v783 = vrot.slane %v625, 5
      %v784 = vsel %vm772, %v782, %v783
      %v785 = vrot.slane %v749, 5
      %v786 = vrot.slane %v785, 4
      %v787 = vrot.slane %v626, 5
      %v788 = vsel %vm772, %v786, %v787
      %v789 = vrot.slane %v750, 5
      %v790 = vrot.slane %v789, 4
      %v791 = vrot.slane %v627, 5
      %v792 = vsel %vm772, %v790, %v791
      %v793 = vrot.slane %v751, 5
      %v794 = vrot.slane %v793, 4
      %v795 = vrot.slane %v628, 5
      %v796 = vsel %vm772, %v794, %v795
      %v797 = vrot.slane %v752, 5
      %v798 = vrot.slane %v797, 4
      %v799 = vrot.slane %v629, 5
      %v800 = vsel %vm772, %v798, %v799
      %v801 = vrot.slane %v753, 5
      %v802 = vrot.slane %v801, 4
      %v803 = vrot.slane %v630, 5
      %v804 = vsel %vm772, %v802, %v803
      %v805 = vld [vmem:[%s564] sm:$0xf]
      %v806 = vld [vmem:[%s564 + $0x8] sm:$0xf]
      %v807 = vld [vmem:[%s564 + $0x10] sm:$0xf]
      %v808 = vld [vmem:[%s564 + $0x18] sm:$0xf]
      %v809 = vld [vmem:[%s564 + $0x20] sm:$0xf]
      %v810 = vld [vmem:[%s564 + $0x28] sm:$0xf]
      %v811 = vld [vmem:[%s564 + $0x30] sm:$0xf]
      %v812 = vld [vmem:[%s564 + $0x38] sm:$0xf]
      %v813 = vld [vmem:[%s564 + $0x4] sm:$0x1]
      %v814 = vld [vmem:[%s564 + $0xc] sm:$0x1]
      %v815 = vld [vmem:[%s564 + $0x14] sm:$0x1]
      %v816 = vld [vmem:[%s564 + $0x1c] sm:$0x1]
      %v817 = vld [vmem:[%s564 + $0x24] sm:$0x1]
      %v818 = vld [vmem:[%s564 + $0x2c] sm:$0x1]
      %v819 = vld [vmem:[%s564 + $0x34] sm:$0x1]
      %v820 = vld [vmem:[%s564 + $0x3c] sm:$0x1]
      %v822 = vshrl.u32 %v805, 16
      %v824 = vrot.slane %v822, 4
      %v825 = vshll.u32 %v805, 16
      %v827 = vrot.slane %v825, 5
      %v828 = vor.u32 %v824, %v827
      %v829 = vrot.slane %v828, 4
      %v831 = vshll.u32 %v813, 16
      %v833 = vrot.slane %v831, 5
      %v834 = vsel %vm633, %v829, %v833
      %v836 = vshrl.u32 %v806, 16
      %v838 = vrot.slane %v836, 4
      %v839 = vshll.u32 %v806, 16
      %v841 = vrot.slane %v839, 5
      %v842 = vor.u32 %v838, %v841
      %v843 = vrot.slane %v842, 4
      %v845 = vshll.u32 %v814, 16
      %v847 = vrot.slane %v845, 5
      %v848 = vsel %vm633, %v843, %v847
      %v850 = vshrl.u32 %v807, 16
      %v852 = vrot.slane %v850, 4
      %v853 = vshll.u32 %v807, 16
      %v855 = vrot.slane %v853, 5
      %v856 = vor.u32 %v852, %v855
      %v857 = vrot.slane %v856, 4
      %v859 = vshll.u32 %v815, 16
      %v861 = vrot.slane %v859, 5
      %v862 = vsel %vm633, %v857, %v861
      %v864 = vshrl.u32 %v808, 16
      %v866 = vrot.slane %v864, 4
      %v867 = vshll.u32 %v808, 16
      %v869 = vrot.slane %v867, 5
      %v870 = vor.u32 %v866, %v869
      %v871 = vrot.slane %v870, 4
      %v873 = vshll.u32 %v816, 16
      %v875 = vrot.slane %v873, 5
      %v876 = vsel %vm633, %v871, %v875
      %v878 = vshrl.u32 %v809, 16
      %v880 = vrot.slane %v878, 4
      %v881 = vshll.u32 %v809, 16
      %v883 = vrot.slane %v881, 5
      %v884 = vor.u32 %v880, %v883
      %v885 = vrot.slane %v884, 4
      %v887 = vshll.u32 %v817, 16
      %v889 = vrot.slane %v887, 5
      %v890 = vsel %vm633, %v885, %v889
      %v892 = vshrl.u32 %v810, 16
      %v894 = vrot.slane %v892, 4
      %v895 = vshll.u32 %v810, 16
      %v897 = vrot.slane %v895, 5
      %v898 = vor.u32 %v894, %v897
      %v899 = vrot.slane %v898, 4
      %v901 = vshll.u32 %v818, 16
      %v903 = vrot.slane %v901, 5
      %v904 = vsel %vm633, %v899, %v903
      %v906 = vshrl.u32 %v811, 16
      %v908 = vrot.slane %v906, 4
      %v909 = vshll.u32 %v811, 16
      %v911 = vrot.slane %v909, 5
      %v912 = vor.u32 %v908, %v911
      %v913 = vrot.slane %v912, 4
      %v915 = vshll.u32 %v819, 16
      %v917 = vrot.slane %v915, 5
      %v918 = vsel %vm633, %v913, %v917
      %v920 = vshrl.u32 %v812, 16
      %v922 = vrot.slane %v920, 4
      %v923 = vshll.u32 %v812, 16
      %v925 = vrot.slane %v923, 5
      %v926 = vor.u32 %v922, %v925
      %v927 = vrot.slane %v926, 4
      %v929 = vshll.u32 %v820, 16
      %v931 = vrot.slane %v929, 5
      %v932 = vsel %vm633, %v927, %v931
      %v933 = vld [vmem:[%s564] sm:$0xe]
      %v934 = vld [vmem:[%s564 + $0x8] sm:$0xe]
      %v935 = vld [vmem:[%s564 + $0x10] sm:$0xe]
      %v936 = vld [vmem:[%s564 + $0x18] sm:$0xe]
      %v937 = vld [vmem:[%s564 + $0x20] sm:$0xe]
      %v938 = vld [vmem:[%s564 + $0x28] sm:$0xe]
      %v939 = vld [vmem:[%s564 + $0x30] sm:$0xe]
      %v940 = vld [vmem:[%s564 + $0x38] sm:$0xe]
      %v957 = vrot.slane %v933, 5
      %v958 = vrot.slane %v957, 4
      %v959 = vrot.slane %v813, 5
      %v960 = vsel %vm772, %v958, %v959
      %v961 = vrot.slane %v934, 5
      %v962 = vrot.slane %v961, 4
      %v963 = vrot.slane %v814, 5
      %v964 = vsel %vm772, %v962, %v963
      %v965 = vrot.slane %v935, 5
      %v966 = vrot.slane %v965, 4
      %v967 = vrot.slane %v815, 5
      %v968 = vsel %vm772, %v966, %v967
      %v969 = vrot.slane %v936, 5
      %v970 = vrot.slane %v969, 4
      %v971 = vrot.slane %v816, 5
      %v972 = vsel %vm772, %v970, %v971
      %v973 = vrot.slane %v937, 5
      %v974 = vrot.slane %v973, 4
      %v975 = vrot.slane %v817, 5
      %v976 = vsel %vm772, %v974, %v975
      %v977 = vrot.slane %v938, 5
      %v978 = vrot.slane %v977, 4
      %v979 = vrot.slane %v818, 5
      %v980 = vsel %vm772, %v978, %v979
      %v981 = vrot.slane %v939, 5
      %v982 = vrot.slane %v981, 4
      %v983 = vrot.slane %v819, 5
      %v984 = vsel %vm772, %v982, %v983
      %v985 = vrot.slane %v940, 5
      %v986 = vrot.slane %v985, 4
      %v987 = vrot.slane %v820, 5
      %v988 = vsel %vm772, %v986, %v987
      %s989 = scalar_lea.vmem [#allocation2], 16
      %v990 = vld [vmem:[%s989] sm:$0xf]
      %v991 = vld [vmem:[%s989 + $0x8] sm:$0xf]
      %v992 = vld [vmem:[%s989 + $0x10] sm:$0xf]
      %v993 = vld [vmem:[%s989 + $0x18] sm:$0xf]
      %v994 = vld [vmem:[%s989 + $0x20] sm:$0xf]
      %v995 = vld [vmem:[%s989 + $0x28] sm:$0xf]
      %v996 = vld [vmem:[%s989 + $0x30] sm:$0xf]
      %v997 = vld [vmem:[%s989 + $0x38] sm:$0xf]
      %v998 = vld [vmem:[%s989 + $0x4] sm:$0x1]
      %v999 = vld [vmem:[%s989 + $0xc] sm:$0x1]
      %v1000 = vld [vmem:[%s989 + $0x14] sm:$0x1]
      %v1001 = vld [vmem:[%s989 + $0x1c] sm:$0x1]
      %v1002 = vld [vmem:[%s989 + $0x24] sm:$0x1]
      %v1003 = vld [vmem:[%s989 + $0x2c] sm:$0x1]
      %v1004 = vld [vmem:[%s989 + $0x34] sm:$0x1]
      %v1005 = vld [vmem:[%s989 + $0x3c] sm:$0x1]
      %v1007 = vshrl.u32 %v990, 16
      %v1009 = vrot.slane %v1007, 4
      %v1010 = vshll.u32 %v990, 16
      %v1012 = vrot.slane %v1010, 5
      %v1013 = vor.u32 %v1009, %v1012
      %v1014 = vrot.slane %v1013, 4
      %v1016 = vshll.u32 %v998, 16
      %v1018 = vrot.slane %v1016, 5
      %v1019 = vsel %vm633, %v1014, %v1018
      %v1021 = vshrl.u32 %v991, 16
      %v1023 = vrot.slane %v1021, 4
      %v1024 = vshll.u32 %v991, 16
      %v1026 = vrot.slane %v1024, 5
      %v1027 = vor.u32 %v1023, %v1026
      %v1028 = vrot.slane %v1027, 4
      %v1030 = vshll.u32 %v999, 16
      %v1032 = vrot.slane %v1030, 5
      %v1033 = vsel %vm633, %v1028, %v1032
      %v1035 = vshrl.u32 %v992, 16
      %v1037 = vrot.slane %v1035, 4
      %v1038 = vshll.u32 %v992, 16
      %v1040 = vrot.slane %v1038, 5
      %v1041 = vor.u32 %v1037, %v1040
      %v1042 = vrot.slane %v1041, 4
      %v1044 = vshll.u32 %v1000, 16
      %v1046 = vrot.slane %v1044, 5
      %v1047 = vsel %vm633, %v1042, %v1046
      %v1049 = vshrl.u32 %v993, 16
      %v1051 = vrot.slane %v1049, 4
      %v1052 = vshll.u32 %v993, 16
      %v1054 = vrot.slane %v1052, 5
      %v1055 = vor.u32 %v1051, %v1054
      %v1056 = vrot.slane %v1055, 4
      %v1058 = vshll.u32 %v1001, 16
      %v1060 = vrot.slane %v1058, 5
      %v1061 = vsel %vm633, %v1056, %v1060
      %v1063 = vshrl.u32 %v994, 16
      %v1065 = vrot.slane %v1063, 4
      %v1066 = vshll.u32 %v994, 16
      %v1068 = vrot.slane %v1066, 5
      %v1069 = vor.u32 %v1065, %v1068
      %v1070 = vrot.slane %v1069, 4
      %v1072 = vshll.u32 %v1002, 16
      %v1074 = vrot.slane %v1072, 5
      %v1075 = vsel %vm633, %v1070, %v1074
      %v1077 = vshrl.u32 %v995, 16
      %v1079 = vrot.slane %v1077, 4
      %v1080 = vshll.u32 %v995, 16
      %v1082 = vrot.slane %v1080, 5
      %v1083 = vor.u32 %v1079, %v1082
      %v1084 = vrot.slane %v1083, 4
      %v1086 = vshll.u32 %v1003, 16
      %v1088 = vrot.slane %v1086, 5
      %v1089 = vsel %vm633, %v1084, %v1088
      %v1091 = vshrl.u32 %v996, 16
      %v1093 = vrot.slane %v1091, 4
      %v1094 = vshll.u32 %v996, 16
      %v1096 = vrot.slane %v1094, 5
      %v1097 = vor.u32 %v1093, %v1096
      %v1098 = vrot.slane %v1097, 4
      %v1100 = vshll.u32 %v1004, 16
      %v1102 = vrot.slane %v1100, 5
      %v1103 = vsel %vm633, %v1098, %v1102
      %v1105 = vshrl.u32 %v997, 16
      %v1107 = vrot.slane %v1105, 4
      %v1108 = vshll.u32 %v997, 16
      %v1110 = vrot.slane %v1108, 5
      %v1111 = vor.u32 %v1107, %v1110
      %v1112 = vrot.slane %v1111, 4
      %v1114 = vshll.u32 %v1005, 16
      %v1116 = vrot.slane %v1114, 5
      %v1117 = vsel %vm633, %v1112, %v1116
      %v1118 = vld [vmem:[%s989] sm:$0xe]
      %v1119 = vld [vmem:[%s989 + $0x8] sm:$0xe]
      %v1120 = vld [vmem:[%s989 + $0x10] sm:$0xe]
      %v1121 = vld [vmem:[%s989 + $0x18] sm:$0xe]
      %v1122 = vld [vmem:[%s989 + $0x20] sm:$0xe]
      %v1123 = vld [vmem:[%s989 + $0x28] sm:$0xe]
      %v1124 = vld [vmem:[%s989 + $0x30] sm:$0xe]
      %v1125 = vld [vmem:[%s989 + $0x38] sm:$0xe]
      %v1142 = vrot.slane %v1118, 5
      %v1143 = vrot.slane %v1142, 4
      %v1144 = vrot.slane %v998, 5
      %v1145 = vsel %vm772, %v1143, %v1144
      %v1146 = vrot.slane %v1119, 5
      %v1147 = vrot.slane %v1146, 4
      %v1148 = vrot.slane %v999, 5
      %v1149 = vsel %vm772, %v1147, %v1148
      %v1150 = vrot.slane %v1120, 5
      %v1151 = vrot.slane %v1150, 4
      %v1152 = vrot.slane %v1000, 5
      %v1153 = vsel %vm772, %v1151, %v1152
      %v1154 = vrot.slane %v1121, 5
      %v1155 = vrot.slane %v1154, 4
      %v1156 = vrot.slane %v1001, 5
      %v1157 = vsel %vm772, %v1155, %v1156
      %v1158 = vrot.slane %v1122, 5
      %v1159 = vrot.slane %v1158, 4
      %v1160 = vrot.slane %v1002, 5
      %v1161 = vsel %vm772, %v1159, %v1160
      %v1162 = vrot.slane %v1123, 5
      %v1163 = vrot.slane %v1162, 4
      %v1164 = vrot.slane %v1003, 5
      %v1165 = vsel %vm772, %v1163, %v1164
      %v1166 = vrot.slane %v1124, 5
      %v1167 = vrot.slane %v1166, 4
      %v1168 = vrot.slane %v1004, 5
      %v1169 = vsel %vm772, %v1167, %v1168
      %v1170 = vrot.slane %v1125, 5
      %v1171 = vrot.slane %v1170, 4
      %v1172 = vrot.slane %v1005, 5
      %v1173 = vsel %vm772, %v1171, %v1172
      %v1182 = vunpack.c.l.b16 %v615
      %v1183 = vunpack.c.l.b16 %v616
      %v1184 = vunpack.c.l.b16 %v617
      %v1185 = vunpack.c.l.b16 %v618
      %v1186 = vunpack.c.l.b16 %v619
      %v1187 = vunpack.c.l.b16 %v620
      %v1188 = vunpack.c.l.b16 %v621
      %v1189 = vunpack.c.l.b16 %v622
      %v1190 = vpack.c.b16 %v1183, %v1182
      %v1191 = vpack.c.b16 %v1185, %v1184
      %v1192 = vpack.c.b16 %v1187, %v1186
      %v1193 = vpack.c.b16 %v1189, %v1188
      %v1194 = vunpack.c.l.b16 %v647
      %v1195 = vunpack.c.l.b16 %v661
      %v1196 = vunpack.c.l.b16 %v675
      %v1197 = vunpack.c.l.b16 %v689
      %v1198 = vunpack.c.l.b16 %v703
      %v1199 = vunpack.c.l.b16 %v717
      %v1200 = vunpack.c.l.b16 %v731
      %v1201 = vunpack.c.l.b16 %v745
      %v1202 = vpack.c.b16 %v1195, %v1194
      %v1203 = vpack.c.b16 %v1197, %v1196
      %v1204 = vpack.c.b16 %v1199, %v1198
      %v1205 = vpack.c.b16 %v1201, %v1200
      %1206 = vrot.lane.b32.xlu0 %v1202, 4
      %v1207 = vpop.permute.xlu0 %1206
      %1208 = vrot.lane.b32.xlu0 %v1203, 4
      %v1209 = vpop.permute.xlu0 %1208
      %1210 = vrot.lane.b32.xlu0 %v1204, 4
      %v1211 = vpop.permute.xlu0 %1210
      %1212 = vrot.lane.b32.xlu0 %v1205, 4
      %v1213 = vpop.permute.xlu0 %1212
      %v1214 = vunpack.c.l.b16 %v776
      %v1215 = vunpack.c.l.b16 %v780
      %v1216 = vunpack.c.l.b16 %v784
      %v1217 = vunpack.c.l.b16 %v788
      %v1218 = vunpack.c.l.b16 %v792
      %v1219 = vunpack.c.l.b16 %v796
      %v1220 = vunpack.c.l.b16 %v800
      %v1221 = vunpack.c.l.b16 %v804
      %v1222 = vpack.c.b16 %v1215, %v1214
      %v1223 = vpack.c.b16 %v1217, %v1216
      %v1224 = vpack.c.b16 %v1219, %v1218
      %v1225 = vpack.c.b16 %v1221, %v1220
      %1226 = vrot.lane.b32.xlu0 %v1222, 8
      %v1227 = vpop.permute.xlu0 %1226
      %1228 = vrot.lane.b32.xlu0 %v1223, 8
      %v1229 = vpop.permute.xlu0 %1228
      %1230 = vrot.lane.b32.xlu0 %v1224, 8
      %v1231 = vpop.permute.xlu0 %1230
      %1232 = vrot.lane.b32.xlu0 %v1225, 8
      %v1233 = vpop.permute.xlu0 %1232
      %v1242 = vunpack.c.l.b16 %v805
      %v1243 = vunpack.c.l.b16 %v806
      %v1244 = vunpack.c.l.b16 %v807
      %v1245 = vunpack.c.l.b16 %v808
      %v1246 = vunpack.c.l.b16 %v809
      %v1247 = vunpack.c.l.b16 %v810
      %v1248 = vunpack.c.l.b16 %v811
      %v1249 = vunpack.c.l.b16 %v812
      %v1250 = vpack.c.b16 %v1243, %v1242
      %v1251 = vpack.c.b16 %v1245, %v1244
      %v1252 = vpack.c.b16 %v1247, %v1246
      %v1253 = vpack.c.b16 %v1249, %v1248
      %1254 = vrot.lane.b32.xlu0 %v1250, 12
      %v1255 = vpop.permute.xlu0 %1254
      %1256 = vrot.lane.b32.xlu0 %v1251, 12
      %v1257 = vpop.permute.xlu0 %1256
      %1258 = vrot.lane.b32.xlu0 %v1252, 12
      %v1259 = vpop.permute.xlu0 %1258
      %1260 = vrot.lane.b32.xlu0 %v1253, 12
      %v1261 = vpop.permute.xlu0 %1260
      %v1262 = vunpack.c.l.b16 %v834
      %v1263 = vunpack.c.l.b16 %v848
      %v1264 = vunpack.c.l.b16 %v862
      %v1265 = vunpack.c.l.b16 %v876
      %v1266 = vunpack.c.l.b16 %v890
      %v1267 = vunpack.c.l.b16 %v904
      %v1268 = vunpack.c.l.b16 %v918
      %v1269 = vunpack.c.l.b16 %v932
      %v1270 = vpack.c.b16 %v1263, %v1262
      %v1271 = vpack.c.b16 %v1265, %v1264
      %v1272 = vpack.c.b16 %v1267, %v1266
      %v1273 = vpack.c.b16 %v1269, %v1268
      %1274 = vrot.lane.b32.xlu0 %v1270, 16
      %v1275 = vpop.permute.xlu0 %1274
      %1276 = vrot.lane.b32.xlu0 %v1271, 16
      %v1277 = vpop.permute.xlu0 %1276
      %1278 = vrot.lane.b32.xlu0 %v1272, 16
      %v1279 = vpop.permute.xlu0 %1278
      %1280 = vrot.lane.b32.xlu0 %v1273, 16
      %v1281 = vpop.permute.xlu0 %1280
      %v1282 = vunpack.c.l.b16 %v960
      %v1283 = vunpack.c.l.b16 %v964
      %v1284 = vunpack.c.l.b16 %v968
      %v1285 = vunpack.c.l.b16 %v972
      %v1286 = vunpack.c.l.b16 %v976
      %v1287 = vunpack.c.l.b16 %v980
      %v1288 = vunpack.c.l.b16 %v984
      %v1289 = vunpack.c.l.b16 %v988
      %v1290 = vpack.c.b16 %v1283, %v1282
      %v1291 = vpack.c.b16 %v1285, %v1284
      %v1292 = vpack.c.b16 %v1287, %v1286
      %v1293 = vpack.c.b16 %v1289, %v1288
      %1294 = vrot.lane.b32.xlu0 %v1290, 20
      %v1295 = vpop.permute.xlu0 %1294
      %1296 = vrot.lane.b32.xlu0 %v1291, 20
      %v1297 = vpop.permute.xlu0 %1296
      %1298 = vrot.lane.b32.xlu0 %v1292, 20
      %v1299 = vpop.permute.xlu0 %1298
      %1300 = vrot.lane.b32.xlu0 %v1293, 20
      %v1301 = vpop.permute.xlu0 %1300
      %v1310 = vunpack.c.l.b16 %v990
      %v1311 = vunpack.c.l.b16 %v991
      %v1312 = vunpack.c.l.b16 %v992
      %v1313 = vunpack.c.l.b16 %v993
      %v1314 = vunpack.c.l.b16 %v994
      %v1315 = vunpack.c.l.b16 %v995
      %v1316 = vunpack.c.l.b16 %v996
      %v1317 = vunpack.c.l.b16 %v997
      %v1318 = vpack.c.b16 %v1311, %v1310
      %v1319 = vpack.c.b16 %v1313, %v1312
      %v1320 = vpack.c.b16 %v1315, %v1314
      %v1321 = vpack.c.b16 %v1317, %v1316
      %1322 = vrot.lane.b32.xlu0 %v1318, 24
      %v1323 = vpop.permute.xlu0 %1322
      %1324 = vrot.lane.b32.xlu0 %v1319, 24
      %v1325 = vpop.permute.xlu0 %1324
      %1326 = vrot.lane.b32.xlu0 %v1320, 24
      %v1327 = vpop.permute.xlu0 %1326
      %1328 = vrot.lane.b32.xlu0 %v1321, 24
      %v1329 = vpop.permute.xlu0 %1328
      %v1330 = vunpack.c.l.b16 %v1019
      %v1331 = vunpack.c.l.b16 %v1033
      %v1332 = vunpack.c.l.b16 %v1047
      %v1333 = vunpack.c.l.b16 %v1061
      %v1334 = vunpack.c.l.b16 %v1075
      %v1335 = vunpack.c.l.b16 %v1089
      %v1336 = vunpack.c.l.b16 %v1103
      %v1337 = vunpack.c.l.b16 %v1117
      %v1338 = vpack.c.b16 %v1331, %v1330
      %v1339 = vpack.c.b16 %v1333, %v1332
      %v1340 = vpack.c.b16 %v1335, %v1334
      %v1341 = vpack.c.b16 %v1337, %v1336
      %1342 = vrot.lane.b32.xlu0 %v1338, 28
      %v1343 = vpop.permute.xlu0 %1342
      %1344 = vrot.lane.b32.xlu0 %v1339, 28
      %v1345 = vpop.permute.xlu0 %1344
      %1346 = vrot.lane.b32.xlu0 %v1340, 28
      %v1347 = vpop.permute.xlu0 %1346
      %1348 = vrot.lane.b32.xlu0 %v1341, 28
      %v1349 = vpop.permute.xlu0 %1348
      %v1350 = vunpack.c.l.b16 %v1145
      %v1351 = vunpack.c.l.b16 %v1149
      %v1352 = vunpack.c.l.b16 %v1153
      %v1353 = vunpack.c.l.b16 %v1157
      %v1354 = vunpack.c.l.b16 %v1161
      %v1355 = vunpack.c.l.b16 %v1165
      %v1356 = vunpack.c.l.b16 %v1169
      %v1357 = vunpack.c.l.b16 %v1173
      %v1358 = vpack.c.b16 %v1351, %v1350
      %v1359 = vpack.c.b16 %v1353, %v1352
      %v1360 = vpack.c.b16 %v1355, %v1354
      %v1361 = vpack.c.b16 %v1357, %v1356
      %1362 = vrot.lane.b32.xlu0 %v1358, 32
      %v1363 = vpop.permute.xlu0 %1362
      %1364 = vrot.lane.b32.xlu0 %v1359, 32
      %v1365 = vpop.permute.xlu0 %1364
      %1366 = vrot.lane.b32.xlu0 %v1360, 32
      %v1367 = vpop.permute.xlu0 %1366
      %1368 = vrot.lane.b32.xlu0 %v1361, 32
      %v1369 = vpop.permute.xlu0 %1368
      %vm1370 = vcmask 31744
      %v1373 = vsel %vm1370, %v1190, %v1207
      %v1376 = vsel %vm1370, %v1191, %v1209
      %v1379 = vsel %vm1370, %v1192, %v1211
      %v1382 = vsel %vm1370, %v1193, %v1213
      %vm1383 = vcmask 64512
      %v1385 = vsel %vm1383, %v1373, %v1227
      %v1387 = vsel %vm1383, %v1376, %v1229
      %v1389 = vsel %vm1383, %v1379, %v1231
      %v1391 = vsel %vm1383, %v1382, %v1233
      %vm1392 = vcmask 97280
      %v1394 = vsel %vm1392, %v1385, %v1255
      %v1396 = vsel %vm1392, %v1387, %v1257
      %v1398 = vsel %vm1392, %v1389, %v1259
      %v1400 = vsel %vm1392, %v1391, %v1261
      %vm1401 = vcmask 130048
      %v1403 = vsel %vm1401, %v1394, %v1275
      %v1405 = vsel %vm1401, %v1396, %v1277
      %v1407 = vsel %vm1401, %v1398, %v1279
      %v1409 = vsel %vm1401, %v1400, %v1281
      %vm1410 = vcmask 162816
      %v1412 = vsel %vm1410, %v1403, %v1295
      %v1414 = vsel %vm1410, %v1405, %v1297
      %v1416 = vsel %vm1410, %v1407, %v1299
      %v1418 = vsel %vm1410, %v1409, %v1301
      %vm1419 = vcmask 195584
      %v1421 = vsel %vm1419, %v1412, %v1323
      %v1423 = vsel %vm1419, %v1414, %v1325
      %v1425 = vsel %vm1419, %v1416, %v1327
      %v1427 = vsel %vm1419, %v1418, %v1329
      %vm1428 = vcmask 228352
      %v1430 = vsel %vm1428, %v1421, %v1343
      %v1432 = vsel %vm1428, %v1423, %v1345
      %v1434 = vsel %vm1428, %v1425, %v1347
      %v1436 = vsel %vm1428, %v1427, %v1349
      %vm1437 = vcmask 261120
      %v1439 = vsel %vm1437, %v1430, %v1363
      %v1441 = vsel %vm1437, %v1432, %v1365
      %v1443 = vsel %vm1437, %v1434, %v1367
      %v1445 = vsel %vm1437, %v1436, %v1369
      %v1446 = vld [vmem:[%s1] sm:$0xf]
      %v1447 = vld [vmem:[%s1 + $0x4] sm:$0xf]
      %v1448 = vld [vmem:[%s1 + $0x8] sm:$0xf]
      %v1449 = vld [vmem:[%s1 + $0xc] sm:$0xf]
      %v1450 = vld [vmem:[%s1 + $0x10] sm:$0x3]
      %v1456 = vunpack.c.l.b16 %v1446
      %v1457 = vunpack.c.l.b16 %v1447
      %v1458 = vunpack.c.l.b16 %v1448
      %v1459 = vunpack.c.l.b16 %v1449
      %v1460 = vunpack.c.l.b16 %v1450
      %v1461 = vpack.c.b16 %v1457, %v1456
      %v1462 = vpack.c.b16 %v1459, %v1458
      %v1463 = vpack.c.b16 %v1460, %v1460
      %vm1466 = vcmask 293888
      %v1467 = vsel %vm1466, %v1439, 0
      %v1469 = vsel %vm1466, %v1441, 0
      %v1471 = vsel %vm1466, %v1443, 0
      %v1473 = vsel %vm1466, %v1445, 0
      %vm1475 = vcmask 1041408
      %v1477 = vsel %vm1475, %v1463, 0
      %1479 = vmatpush.bf16.msra.mxu0 0
      %1480 = vmatpush.bf16.msra.mxu0 0
      %1481 = vmatpush.bf16.msra.mxu0 0
      %1482 = vmatpush.bf16.msra.mxu0 0
      %1483 = vmatpush.bf16.msra.mxu0 0
      %1484 = vmatpush.bf16.msra.mxu0 %v1477
      %1485 = vmatpush.bf16.msra.mxu0 %v1462
      %1486 = vmatpush.bf16.msra.mxu0 %v1461
      %1487 = vmatmul.bf16.gmra.mxu0 %v1467
      %v1488 = vpop.f32.mrf.mxu0
      %v1489 = vadd.f32 0.0, %v1488
      %v1490 = vpop.f32.mrf.mxu0
      %v1491 = vadd.f32 0.0, %v1490
      %1492 = vmatmul.bf16.gmra.mxu0 %v1469
      %v1493 = vpop.f32.mrf.mxu0
      %v1494 = vadd.f32 0.0, %v1493
      %v1495 = vpop.f32.mrf.mxu0
      %v1496 = vadd.f32 0.0, %v1495
      %1497 = vmatmul.bf16.gmra.mxu0 %v1471
      %v1498 = vpop.f32.mrf.mxu0
      %v1499 = vadd.f32 0.0, %v1498
      %v1500 = vpop.f32.mrf.mxu0
      %v1501 = vadd.f32 0.0, %v1500
      %1502 = vmatmul.bf16.gmra.mxu0 %v1473
      %v1503 = vpop.f32.mrf.mxu0
      %v1504 = vadd.f32 0.0, %v1503
      %v1505 = vpop.f32.mrf.mxu0
      %v1506 = vadd.f32 0.0, %v1505
      %1507 = vdwg.mxu0
      %v1508 = vld [vmem:[%s2] sm:$0x1]
      %v1510 = vperm.slane %v1508, 0
      %v1512 = vmul.f32 %v1489, %v1510
      %v1513 = vmul.f32 %v1491, %v1510
      %v1514 = vmul.f32 %v1494, %v1510
      %v1515 = vmul.f32 %v1496, %v1510
      %v1516 = vmul.f32 %v1499, %v1510
      %v1517 = vmul.f32 %v1501, %v1510
      %v1518 = vmul.f32 %v1504, %v1510
      %v1519 = vmul.f32 %v1506, %v1510
      %v1520 = vld [vmem:[%s3] sm:$0x1]
      %v1522 = vperm.slane %v1520, 0
      %v1524 = vadd.f32 %v1512, %v1522
      %v1525 = vadd.f32 %v1513, %v1522
      %v1526 = vadd.f32 %v1514, %v1522
      %v1527 = vadd.f32 %v1515, %v1522
      %v1528 = vadd.f32 %v1516, %v1522
      %v1529 = vadd.f32 %v1517, %v1522
      %v1530 = vadd.f32 %v1518, %v1522
      %v1531 = vadd.f32 %v1519, %v1522
      %v1532 = vmax.f32 %v1524, 0.0
      %v1533 = vmax.f32 %v1525, 0.0
      %v1534 = vmax.f32 %v1526, 0.0
      %v1535 = vmax.f32 %v1527, 0.0
      %v1536 = vmax.f32 %v1528, 0.0
      %v1537 = vmax.f32 %v1529, 0.0
      %v1538 = vmax.f32 %v1530, 0.0
      %v1539 = vmax.f32 %v1531, 0.0
      %v1540 = vpack.c.bf16 %v1532, %v1532
      %v1541 = vpack.c.bf16 %v1533, %v1533
      %v1542 = vpack.c.bf16 %v1534, %v1534
      %v1543 = vpack.c.bf16 %v1535, %v1535
      %v1544 = vpack.c.bf16 %v1536, %v1536
      %v1545 = vpack.c.bf16 %v1537, %v1537
      %v1546 = vpack.c.bf16 %v1538, %v1538
      %v1547 = vpack.c.bf16 %v1539, %v1539
      %v1549 = vshrl.u32 %v1540, 16
      %v1551 = vrot.slane %v1549, 7
      %v1552 = vshll.u32 %v1540, 16
      %v1554 = vor.u32 %v1551, %v1552
      %v1555 = vrot.slane %v1551, 4
      %v1557 = vshrl.u32 %v1541, 16
      %v1559 = vrot.slane %v1557, 7
      %v1560 = vshll.u32 %v1541, 16
      %v1562 = vor.u32 %v1559, %v1560
      %v1563 = vrot.slane %v1559, 4
      %v1565 = vshrl.u32 %v1542, 16
      %v1567 = vrot.slane %v1565, 7
      %v1568 = vshll.u32 %v1542, 16
      %v1570 = vor.u32 %v1567, %v1568
      %v1571 = vrot.slane %v1567, 4
      %v1573 = vshrl.u32 %v1543, 16
      %v1575 = vrot.slane %v1573, 7
      %v1576 = vshll.u32 %v1543, 16
      %v1578 = vor.u32 %v1575, %v1576
      %v1579 = vrot.slane %v1575, 4
      %v1581 = vshrl.u32 %v1544, 16
      %v1583 = vrot.slane %v1581, 7
      %v1584 = vshll.u32 %v1544, 16
      %v1586 = vor.u32 %v1583, %v1584
      %v1587 = vrot.slane %v1583, 4
      %v1589 = vshrl.u32 %v1545, 16
      %v1591 = vrot.slane %v1589, 7
      %v1592 = vshll.u32 %v1545, 16
      %v1594 = vor.u32 %v1591, %v1592
      %v1595 = vrot.slane %v1591, 4
      %v1597 = vshrl.u32 %v1546, 16
      %v1599 = vrot.slane %v1597, 7
      %v1600 = vshll.u32 %v1546, 16
      %v1602 = vor.u32 %v1599, %v1600
      %v1603 = vrot.slane %v1599, 4
      %v1605 = vshrl.u32 %v1547, 16
      %v1607 = vrot.slane %v1605, 7
      %v1608 = vshll.u32 %v1547, 16
      %v1610 = vor.u32 %v1607, %v1608
      %v1611 = vrot.slane %v1607, 4
      %s1628 = scalar_lea.vmem [#allocation3], 8
      %vm1629 = vcmask 1043456
      %vm1630 = vmand %vm1629, %vm320
      %v1631 = vld [vmem:[%s1628] sm:$0xf]
      %v1632 = vsel %vm1630, %v1554, %v1631
      %1633 = vst [vmem:[%s1628] sm:$0xf] %v1632
      %v1634 = vld [vmem:[%s1628 + $0x4] sm:$0x1]
      %v1635 = vsel %vm358, %v1555, %v1634
      %1636 = vst [vmem:[%s1628 + $0x4] sm:$0x1] %v1635
      %v1637 = vld [vmem:[%s1628 + $0x8] sm:$0xf]
      %v1638 = vsel %vm1630, %v1562, %v1637
      %1639 = vst [vmem:[%s1628 + $0x8] sm:$0xf] %v1638
      %v1640 = vld [vmem:[%s1628 + $0xc] sm:$0x1]
      %v1641 = vsel %vm358, %v1563, %v1640
      %1642 = vst [vmem:[%s1628 + $0xc] sm:$0x1] %v1641
      %v1643 = vld [vmem:[%s1628 + $0x10] sm:$0xf]
      %v1644 = vsel %vm1630, %v1570, %v1643
      %1645 = vst [vmem:[%s1628 + $0x10] sm:$0xf] %v1644
      %v1646 = vld [vmem:[%s1628 + $0x14] sm:$0x1]
      %v1647 = vsel %vm358, %v1571, %v1646
      %1648 = vst [vmem:[%s1628 + $0x14] sm:$0x1] %v1647
      %v1649 = vld [vmem:[%s1628 + $0x18] sm:$0xf]
      %v1650 = vsel %vm1630, %v1578, %v1649
      %1651 = vst [vmem:[%s1628 + $0x18] sm:$0xf] %v1650
      %v1652 = vld [vmem:[%s1628 + $0x1c] sm:$0x1]
      %v1653 = vsel %vm358, %v1579, %v1652
      %1654 = vst [vmem:[%s1628 + $0x1c] sm:$0x1] %v1653
      %v1655 = vld [vmem:[%s1628 + $0x20] sm:$0xf]
      %v1656 = vsel %vm1630, %v1586, %v1655
      %1657 = vst [vmem:[%s1628 + $0x20] sm:$0xf] %v1656
      %v1658 = vld [vmem:[%s1628 + $0x24] sm:$0x1]
      %v1659 = vsel %vm358, %v1587, %v1658
      %1660 = vst [vmem:[%s1628 + $0x24] sm:$0x1] %v1659
      %v1661 = vld [vmem:[%s1628 + $0x28] sm:$0xf]
      %v1662 = vsel %vm1630, %v1594, %v1661
      %1663 = vst [vmem:[%s1628 + $0x28] sm:$0xf] %v1662
      %v1664 = vld [vmem:[%s1628 + $0x2c] sm:$0x1]
      %v1665 = vsel %vm358, %v1595, %v1664
      %1666 = vst [vmem:[%s1628 + $0x2c] sm:$0x1] %v1665
      %v1667 = vld [vmem:[%s1628 + $0x30] sm:$0xf]
      %v1668 = vsel %vm1630, %v1602, %v1667
      %1669 = vst [vmem:[%s1628 + $0x30] sm:$0xf] %v1668
      %v1670 = vld [vmem:[%s1628 + $0x34] sm:$0x1]
      %v1671 = vsel %vm358, %v1603, %v1670
      %1672 = vst [vmem:[%s1628 + $0x34] sm:$0x1] %v1671
      %v1673 = vld [vmem:[%s1628 + $0x38] sm:$0xf]
      %v1674 = vsel %vm1630, %v1610, %v1673
      %1675 = vst [vmem:[%s1628 + $0x38] sm:$0xf] %v1674
      %v1676 = vld [vmem:[%s1628 + $0x3c] sm:$0x1]
      %v1677 = vsel %vm358, %v1611, %v1676
      %1678 = vst [vmem:[%s1628 + $0x3c] sm:$0x1] %v1677
      %v1679 = vld [vmem:[#allocation3] sm:$0xf]
      %v1680 = vld [vmem:[#allocation3 + $0x8] sm:$0xf]
      %v1681 = vld [vmem:[#allocation3 + $0x10] sm:$0xf]
      %v1682 = vld [vmem:[#allocation3 + $0x18] sm:$0xf]
      %v1683 = vld [vmem:[#allocation3 + $0x20] sm:$0xf]
      %v1684 = vld [vmem:[#allocation3 + $0x28] sm:$0xf]
      %v1685 = vld [vmem:[#allocation3 + $0x30] sm:$0xf]
      %v1686 = vld [vmem:[#allocation3 + $0x38] sm:$0xf]
      %v1687 = vld [vmem:[#allocation3 + $0x4] sm:$0x1]
      %v1688 = vld [vmem:[#allocation3 + $0xc] sm:$0x1]
      %v1689 = vld [vmem:[#allocation3 + $0x14] sm:$0x1]
      %v1690 = vld [vmem:[#allocation3 + $0x1c] sm:$0x1]
      %v1691 = vld [vmem:[#allocation3 + $0x24] sm:$0x1]
      %v1692 = vld [vmem:[#allocation3 + $0x2c] sm:$0x1]
      %v1693 = vld [vmem:[#allocation3 + $0x34] sm:$0x1]
      %v1694 = vld [vmem:[#allocation3 + $0x3c] sm:$0x1]
      %v1696 = vshrl.u32 %v1679, 16
      %v1698 = vrot.slane %v1696, 4
      %v1699 = vshll.u32 %v1679, 16
      %v1701 = vrot.slane %v1699, 5
      %v1702 = vor.u32 %v1698, %v1701
      %v1703 = vrot.slane %v1702, 4
      %v1705 = vshll.u32 %v1687, 16
      %v1707 = vrot.slane %v1705, 5
      %v1708 = vsel %vm633, %v1703, %v1707
      %v1710 = vshrl.u32 %v1680, 16
      %v1712 = vrot.slane %v1710, 4
      %v1713 = vshll.u32 %v1680, 16
      %v1715 = vrot.slane %v1713, 5
      %v1716 = vor.u32 %v1712, %v1715
      %v1717 = vrot.slane %v1716, 4
      %v1719 = vshll.u32 %v1688, 16
      %v1721 = vrot.slane %v1719, 5
      %v1722 = vsel %vm633, %v1717, %v1721
      %v1724 = vshrl.u32 %v1681, 16
      %v1726 = vrot.slane %v1724, 4
      %v1727 = vshll.u32 %v1681, 16
      %v1729 = vrot.slane %v1727, 5
      %v1730 = vor.u32 %v1726, %v1729
      %v1731 = vrot.slane %v1730, 4
      %v1733 = vshll.u32 %v1689, 16
      %v1735 = vrot.slane %v1733, 5
      %v1736 = vsel %vm633, %v1731, %v1735
      %v1738 = vshrl.u32 %v1682, 16
      %v1740 = vrot.slane %v1738, 4
      %v1741 = vshll.u32 %v1682, 16
      %v1743 = vrot.slane %v1741, 5
      %v1744 = vor.u32 %v1740, %v1743
      %v1745 = vrot.slane %v1744, 4
      %v1747 = vshll.u32 %v1690, 16
      %v1749 = vrot.slane %v1747, 5
      %v1750 = vsel %vm633, %v1745, %v1749
      %v1752 = vshrl.u32 %v1683, 16
      %v1754 = vrot.slane %v1752, 4
      %v1755 = vshll.u32 %v1683, 16
      %v1757 = vrot.slane %v1755, 5
      %v1758 = vor.u32 %v1754, %v1757
      %v1759 = vrot.slane %v1758, 4
      %v1761 = vshll.u32 %v1691, 16
      %v1763 = vrot.slane %v1761, 5
      %v1764 = vsel %vm633, %v1759, %v1763
      %v1766 = vshrl.u32 %v1684, 16
      %v1768 = vrot.slane %v1766, 4
      %v1769 = vshll.u32 %v1684, 16
      %v1771 = vrot.slane %v1769, 5
      %v1772 = vor.u32 %v1768, %v1771
      %v1773 = vrot.slane %v1772, 4
      %v1775 = vshll.u32 %v1692, 16
      %v1777 = vrot.slane %v1775, 5
      %v1778 = vsel %vm633, %v1773, %v1777
      %v1780 = vshrl.u32 %v1685, 16
      %v1782 = vrot.slane %v1780, 4
      %v1783 = vshll.u32 %v1685, 16
      %v1785 = vrot.slane %v1783, 5
      %v1786 = vor.u32 %v1782, %v1785
      %v1787 = vrot.slane %v1786, 4
      %v1789 = vshll.u32 %v1693, 16
      %v1791 = vrot.slane %v1789, 5
      %v1792 = vsel %vm633, %v1787, %v1791
      %v1794 = vshrl.u32 %v1686, 16
      %v1796 = vrot.slane %v1794, 4
      %v1797 = vshll.u32 %v1686, 16
      %v1799 = vrot.slane %v1797, 5
      %v1800 = vor.u32 %v1796, %v1799
      %v1801 = vrot.slane %v1800, 4
      %v1803 = vshll.u32 %v1694, 16
      %v1805 = vrot.slane %v1803, 5
      %v1806 = vsel %vm633, %v1801, %v1805
      %v1807 = vld [vmem:[#allocation3] sm:$0xe]
      %v1808 = vld [vmem:[#allocation3 + $0x8] sm:$0xe]
      %v1809 = vld [vmem:[#allocation3 + $0x10] sm:$0xe]
      %v1810 = vld [vmem:[#allocation3 + $0x18] sm:$0xe]
      %v1811 = vld [vmem:[#allocation3 + $0x20] sm:$0xe]
      %v1812 = vld [vmem:[#allocation3 + $0x28] sm:$0xe]
      %v1813 = vld [vmem:[#allocation3 + $0x30] sm:$0xe]
      %v1814 = vld [vmem:[#allocation3 + $0x38] sm:$0xe]
      %v1831 = vrot.slane %v1807, 5
      %v1832 = vrot.slane %v1831, 4
      %v1833 = vrot.slane %v1687, 5
      %v1834 = vsel %vm772, %v1832, %v1833
      %v1835 = vrot.slane %v1808, 5
      %v1836 = vrot.slane %v1835, 4
      %v1837 = vrot.slane %v1688, 5
      %v1838 = vsel %vm772, %v1836, %v1837
      %v1839 = vrot.slane %v1809, 5
      %v1840 = vrot.slane %v1839, 4
      %v1841 = vrot.slane %v1689, 5
      %v1842 = vsel %vm772, %v1840, %v1841
      %v1843 = vrot.slane %v1810, 5
      %v1844 = vrot.slane %v1843, 4
      %v1845 = vrot.slane %v1690, 5
      %v1846 = vsel %vm772, %v1844, %v1845
      %v1847 = vrot.slane %v1811, 5
      %v1848 = vrot.slane %v1847, 4
      %v1849 = vrot.slane %v1691, 5
      %v1850 = vsel %vm772, %v1848, %v1849
      %v1851 = vrot.slane %v1812, 5
      %v1852 = vrot.slane %v1851, 4
      %v1853 = vrot.slane %v1692, 5
      %v1854 = vsel %vm772, %v1852, %v1853
      %v1855 = vrot.slane %v1813, 5
      %v1856 = vrot.slane %v1855, 4
      %v1857 = vrot.slane %v1693, 5
      %v1858 = vsel %vm772, %v1856, %v1857
      %v1859 = vrot.slane %v1814, 5
      %v1860 = vrot.slane %v1859, 4
      %v1861 = vrot.slane %v1694, 5
      %v1862 = vsel %vm772, %v1860, %v1861
      %v1863 = vld [vmem:[%s1628] sm:$0xf]
      %v1864 = vld [vmem:[%s1628 + $0x8] sm:$0xf]
      %v1865 = vld [vmem:[%s1628 + $0x10] sm:$0xf]
      %v1866 = vld [vmem:[%s1628 + $0x18] sm:$0xf]
      %v1867 = vld [vmem:[%s1628 + $0x20] sm:$0xf]
      %v1868 = vld [vmem:[%s1628 + $0x28] sm:$0xf]
      %v1869 = vld [vmem:[%s1628 + $0x30] sm:$0xf]
      %v1870 = vld [vmem:[%s1628 + $0x38] sm:$0xf]
      %v1871 = vld [vmem:[%s1628 + $0x4] sm:$0x1]
      %v1872 = vld [vmem:[%s1628 + $0xc] sm:$0x1]
      %v1873 = vld [vmem:[%s1628 + $0x14] sm:$0x1]
      %v1874 = vld [vmem:[%s1628 + $0x1c] sm:$0x1]
      %v1875 = vld [vmem:[%s1628 + $0x24] sm:$0x1]
      %v1876 = vld [vmem:[%s1628 + $0x2c] sm:$0x1]
      %v1877 = vld [vmem:[%s1628 + $0x34] sm:$0x1]
      %v1878 = vld [vmem:[%s1628 + $0x3c] sm:$0x1]
      %v1880 = vshrl.u32 %v1863, 16
      %v1882 = vrot.slane %v1880, 4
      %v1883 = vshll.u32 %v1863, 16
      %v1885 = vrot.slane %v1883, 5
      %v1886 = vor.u32 %v1882, %v1885
      %v1887 = vrot.slane %v1886, 4
      %v1889 = vshll.u32 %v1871, 16
      %v1891 = vrot.slane %v1889, 5
      %v1892 = vsel %vm633, %v1887, %v1891
      %v1894 = vshrl.u32 %v1864, 16
      %v1896 = vrot.slane %v1894, 4
      %v1897 = vshll.u32 %v1864, 16
      %v1899 = vrot.slane %v1897, 5
      %v1900 = vor.u32 %v1896, %v1899
      %v1901 = vrot.slane %v1900, 4
      %v1903 = vshll.u32 %v1872, 16
      %v1905 = vrot.slane %v1903, 5
      %v1906 = vsel %vm633, %v1901, %v1905
      %v1908 = vshrl.u32 %v1865, 16
      %v1910 = vrot.slane %v1908, 4
      %v1911 = vshll.u32 %v1865, 16
      %v1913 = vrot.slane %v1911, 5
      %v1914 = vor.u32 %v1910, %v1913
      %v1915 = vrot.slane %v1914, 4
      %v1917 = vshll.u32 %v1873, 16
      %v1919 = vrot.slane %v1917, 5
      %v1920 = vsel %vm633, %v1915, %v1919
      %v1922 = vshrl.u32 %v1866, 16
      %v1924 = vrot.slane %v1922, 4
      %v1925 = vshll.u32 %v1866, 16
      %v1927 = vrot.slane %v1925, 5
      %v1928 = vor.u32 %v1924, %v1927
      %v1929 = vrot.slane %v1928, 4
      %v1931 = vshll.u32 %v1874, 16
      %v1933 = vrot.slane %v1931, 5
      %v1934 = vsel %vm633, %v1929, %v1933
      %v1936 = vshrl.u32 %v1867, 16
      %v1938 = vrot.slane %v1936, 4
      %v1939 = vshll.u32 %v1867, 16
      %v1941 = vrot.slane %v1939, 5
      %v1942 = vor.u32 %v1938, %v1941
      %v1943 = vrot.slane %v1942, 4
      %v1945 = vshll.u32 %v1875, 16
      %v1947 = vrot.slane %v1945, 5
      %v1948 = vsel %vm633, %v1943, %v1947
      %v1950 = vshrl.u32 %v1868, 16
      %v1952 = vrot.slane %v1950, 4
      %v1953 = vshll.u32 %v1868, 16
      %v1955 = vrot.slane %v1953, 5
      %v1956 = vor.u32 %v1952, %v1955
      %v1957 = vrot.slane %v1956, 4
      %v1959 = vshll.u32 %v1876, 16
      %v1961 = vrot.slane %v1959, 5
      %v1962 = vsel %vm633, %v1957, %v1961
      %v1964 = vshrl.u32 %v1869, 16
      %v1966 = vrot.slane %v1964, 4
      %v1967 = vshll.u32 %v1869, 16
      %v1969 = vrot.slane %v1967, 5
      %v1970 = vor.u32 %v1966, %v1969
      %v1971 = vrot.slane %v1970, 4
      %v1973 = vshll.u32 %v1877, 16
      %v1975 = vrot.slane %v1973, 5
      %v1976 = vsel %vm633, %v1971, %v1975
      %v1978 = vshrl.u32 %v1870, 16
      %v1980 = vrot.slane %v1978, 4
      %v1981 = vshll.u32 %v1870, 16
      %v1983 = vrot.slane %v1981, 5
      %v1984 = vor.u32 %v1980, %v1983
      %v1985 = vrot.slane %v1984, 4
      %v1987 = vshll.u32 %v1878, 16
      %v1989 = vrot.slane %v1987, 5
      %v1990 = vsel %vm633, %v1985, %v1989
      %v1991 = vld [vmem:[%s1628] sm:$0xe]
      %v1992 = vld [vmem:[%s1628 + $0x8] sm:$0xe]
      %v1993 = vld [vmem:[%s1628 + $0x10] sm:$0xe]
      %v1994 = vld [vmem:[%s1628 + $0x18] sm:$0xe]
      %v1995 = vld [vmem:[%s1628 + $0x20] sm:$0xe]
      %v1996 = vld [vmem:[%s1628 + $0x28] sm:$0xe]
      %v1997 = vld [vmem:[%s1628 + $0x30] sm:$0xe]
      %v1998 = vld [vmem:[%s1628 + $0x38] sm:$0xe]
      %v2015 = vrot.slane %v1991, 5
      %v2016 = vrot.slane %v2015, 4
      %v2017 = vrot.slane %v1871, 5
      %v2018 = vsel %vm772, %v2016, %v2017
      %v2019 = vrot.slane %v1992, 5
      %v2020 = vrot.slane %v2019, 4
      %v2021 = vrot.slane %v1872, 5
      %v2022 = vsel %vm772, %v2020, %v2021
      %v2023 = vrot.slane %v1993, 5
      %v2024 = vrot.slane %v2023, 4
      %v2025 = vrot.slane %v1873, 5
      %v2026 = vsel %vm772, %v2024, %v2025
      %v2027 = vrot.slane %v1994, 5
      %v2028 = vrot.slane %v2027, 4
      %v2029 = vrot.slane %v1874, 5
      %v2030 = vsel %vm772, %v2028, %v2029
      %v2031 = vrot.slane %v1995, 5
      %v2032 = vrot.slane %v2031, 4
      %v2033 = vrot.slane %v1875, 5
      %v2034 = vsel %vm772, %v2032, %v2033
      %v2035 = vrot.slane %v1996, 5
      %v2036 = vrot.slane %v2035, 4
      %v2037 = vrot.slane %v1876, 5
      %v2038 = vsel %vm772, %v2036, %v2037
      %v2039 = vrot.slane %v1997, 5
      %v2040 = vrot.slane %v2039, 4
      %v2041 = vrot.slane %v1877, 5
      %v2042 = vsel %vm772, %v2040, %v2041
      %v2043 = vrot.slane %v1998, 5
      %v2044 = vrot.slane %v2043, 4
      %v2045 = vrot.slane %v1878, 5
      %v2046 = vsel %vm772, %v2044, %v2045
      %s2047 = scalar_lea.vmem [#allocation3], 16
      %v2048 = vld [vmem:[%s2047] sm:$0xf]
      %v2049 = vld [vmem:[%s2047 + $0x8] sm:$0xf]
      %v2050 = vld [vmem:[%s2047 + $0x10] sm:$0xf]
      %v2051 = vld [vmem:[%s2047 + $0x18] sm:$0xf]
      %v2052 = vld [vmem:[%s2047 + $0x20] sm:$0xf]
      %v2053 = vld [vmem:[%s2047 + $0x28] sm:$0xf]
      %v2054 = vld [vmem:[%s2047 + $0x30] sm:$0xf]
      %v2055 = vld [vmem:[%s2047 + $0x38] sm:$0xf]
      %v2056 = vld [vmem:[%s2047 + $0x4] sm:$0x1]
      %v2057 = vld [vmem:[%s2047 + $0xc] sm:$0x1]
      %v2058 = vld [vmem:[%s2047 + $0x14] sm:$0x1]
      %v2059 = vld [vmem:[%s2047 + $0x1c] sm:$0x1]
      %v2060 = vld [vmem:[%s2047 + $0x24] sm:$0x1]
      %v2061 = vld [vmem:[%s2047 + $0x2c] sm:$0x1]
      %v2062 = vld [vmem:[%s2047 + $0x34] sm:$0x1]
      %v2063 = vld [vmem:[%s2047 + $0x3c] sm:$0x1]
      %v2065 = vshrl.u32 %v2048, 16
      %v2067 = vrot.slane %v2065, 4
      %v2068 = vshll.u32 %v2048, 16
      %v2070 = vrot.slane %v2068, 5
      %v2071 = vor.u32 %v2067, %v2070
      %v2072 = vrot.slane %v2071, 4
      %v2074 = vshll.u32 %v2056, 16
      %v2076 = vrot.slane %v2074, 5
      %v2077 = vsel %vm633, %v2072, %v2076
      %v2079 = vshrl.u32 %v2049, 16
      %v2081 = vrot.slane %v2079, 4
      %v2082 = vshll.u32 %v2049, 16
      %v2084 = vrot.slane %v2082, 5
      %v2085 = vor.u32 %v2081, %v2084
      %v2086 = vrot.slane %v2085, 4
      %v2088 = vshll.u32 %v2057, 16
      %v2090 = vrot.slane %v2088, 5
      %v2091 = vsel %vm633, %v2086, %v2090
      %v2093 = vshrl.u32 %v2050, 16
      %v2095 = vrot.slane %v2093, 4
      %v2096 = vshll.u32 %v2050, 16
      %v2098 = vrot.slane %v2096, 5
      %v2099 = vor.u32 %v2095, %v2098
      %v2100 = vrot.slane %v2099, 4
      %v2102 = vshll.u32 %v2058, 16
      %v2104 = vrot.slane %v2102, 5
      %v2105 = vsel %vm633, %v2100, %v2104
      %v2107 = vshrl.u32 %v2051, 16
      %v2109 = vrot.slane %v2107, 4
      %v2110 = vshll.u32 %v2051, 16
      %v2112 = vrot.slane %v2110, 5
      %v2113 = vor.u32 %v2109, %v2112
      %v2114 = vrot.slane %v2113, 4
      %v2116 = vshll.u32 %v2059, 16
      %v2118 = vrot.slane %v2116, 5
      %v2119 = vsel %vm633, %v2114, %v2118
      %v2121 = vshrl.u32 %v2052, 16
      %v2123 = vrot.slane %v2121, 4
      %v2124 = vshll.u32 %v2052, 16
      %v2126 = vrot.slane %v2124, 5
      %v2127 = vor.u32 %v2123, %v2126
      %v2128 = vrot.slane %v2127, 4
      %v2130 = vshll.u32 %v2060, 16
      %v2132 = vrot.slane %v2130, 5
      %v2133 = vsel %vm633, %v2128, %v2132
      %v2135 = vshrl.u32 %v2053, 16
      %v2137 = vrot.slane %v2135, 4
      %v2138 = vshll.u32 %v2053, 16
      %v2140 = vrot.slane %v2138, 5
      %v2141 = vor.u32 %v2137, %v2140
      %v2142 = vrot.slane %v2141, 4
      %v2144 = vshll.u32 %v2061, 16
      %v2146 = vrot.slane %v2144, 5
      %v2147 = vsel %vm633, %v2142, %v2146
      %v2149 = vshrl.u32 %v2054, 16
      %v2151 = vrot.slane %v2149, 4
      %v2152 = vshll.u32 %v2054, 16
      %v2154 = vrot.slane %v2152, 5
      %v2155 = vor.u32 %v2151, %v2154
      %v2156 = vrot.slane %v2155, 4
      %v2158 = vshll.u32 %v2062, 16
      %v2160 = vrot.slane %v2158, 5
      %v2161 = vsel %vm633, %v2156, %v2160
      %v2163 = vshrl.u32 %v2055, 16
      %v2165 = vrot.slane %v2163, 4
      %v2166 = vshll.u32 %v2055, 16
      %v2168 = vrot.slane %v2166, 5
      %v2169 = vor.u32 %v2165, %v2168
      %v2170 = vrot.slane %v2169, 4
      %v2172 = vshll.u32 %v2063, 16
      %v2174 = vrot.slane %v2172, 5
      %v2175 = vsel %vm633, %v2170, %v2174
      %v2176 = vld [vmem:[%s2047] sm:$0xe]
      %v2177 = vld [vmem:[%s2047 + $0x8] sm:$0xe]
      %v2178 = vld [vmem:[%s2047 + $0x10] sm:$0xe]
      %v2179 = vld [vmem:[%s2047 + $0x18] sm:$0xe]
      %v2180 = vld [vmem:[%s2047 + $0x20] sm:$0xe]
      %v2181 = vld [vmem:[%s2047 + $0x28] sm:$0xe]
      %v2182 = vld [vmem:[%s2047 + $0x30] sm:$0xe]
      %v2183 = vld [vmem:[%s2047 + $0x38] sm:$0xe]
      %v2200 = vrot.slane %v2176, 5
      %v2201 = vrot.slane %v2200, 4
      %v2202 = vrot.slane %v2056, 5
      %v2203 = vsel %vm772, %v2201, %v2202
      %v2204 = vrot.slane %v2177, 5
      %v2205 = vrot.slane %v2204, 4
      %v2206 = vrot.slane %v2057, 5
      %v2207 = vsel %vm772, %v2205, %v2206
      %v2208 = vrot.slane %v2178, 5
      %v2209 = vrot.slane %v2208, 4
      %v2210 = vrot.slane %v2058, 5
      %v2211 = vsel %vm772, %v2209, %v2210
      %v2212 = vrot.slane %v2179, 5
      %v2213 = vrot.slane %v2212, 4
      %v2214 = vrot.slane %v2059, 5
      %v2215 = vsel %vm772, %v2213, %v2214
      %v2216 = vrot.slane %v2180, 5
      %v2217 = vrot.slane %v2216, 4
      %v2218 = vrot.slane %v2060, 5
      %v2219 = vsel %vm772, %v2217, %v2218
      %v2220 = vrot.slane %v2181, 5
      %v2221 = vrot.slane %v2220, 4
      %v2222 = vrot.slane %v2061, 5
      %v2223 = vsel %vm772, %v2221, %v2222
      %v2224 = vrot.slane %v2182, 5
      %v2225 = vrot.slane %v2224, 4
      %v2226 = vrot.slane %v2062, 5
      %v2227 = vsel %vm772, %v2225, %v2226
      %v2228 = vrot.slane %v2183, 5
      %v2229 = vrot.slane %v2228, 4
      %v2230 = vrot.slane %v2063, 5
      %v2231 = vsel %vm772, %v2229, %v2230
      %v2240 = vunpack.c.l.b16 %v1679
      %v2241 = vunpack.c.l.b16 %v1680
      %v2242 = vunpack.c.l.b16 %v1681
      %v2243 = vunpack.c.l.b16 %v1682
      %v2244 = vunpack.c.l.b16 %v1683
      %v2245 = vunpack.c.l.b16 %v1684
      %v2246 = vunpack.c.l.b16 %v1685
      %v2247 = vunpack.c.l.b16 %v1686
      %v2248 = vpack.c.b16 %v2241, %v2240
      %v2249 = vpack.c.b16 %v2243, %v2242
      %v2250 = vpack.c.b16 %v2245, %v2244
      %v2251 = vpack.c.b16 %v2247, %v2246
      %v2256 = vunpack.c.l.b16 %v1708
      %v2257 = vunpack.c.l.b16 %v1722
      %v2258 = vunpack.c.l.b16 %v1736
      %v2259 = vunpack.c.l.b16 %v1750
      %v2260 = vunpack.c.l.b16 %v1764
      %v2261 = vunpack.c.l.b16 %v1778
      %v2262 = vunpack.c.l.b16 %v1792
      %v2263 = vunpack.c.l.b16 %v1806
      %v2264 = vpack.c.b16 %v2257, %v2256
      %v2265 = vpack.c.b16 %v2259, %v2258
      %v2266 = vpack.c.b16 %v2261, %v2260
      %v2267 = vpack.c.b16 %v2263, %v2262
      %v2272 = vunpack.c.l.b16 %v1834
      %v2273 = vunpack.c.l.b16 %v1838
      %v2274 = vunpack.c.l.b16 %v1842
      %v2275 = vunpack.c.l.b16 %v1846
      %v2276 = vunpack.c.l.b16 %v1850
      %v2277 = vunpack.c.l.b16 %v1854
      %v2278 = vunpack.c.l.b16 %v1858
      %v2279 = vunpack.c.l.b16 %v1862
      %v2280 = vpack.c.b16 %v2273, %v2272
      %v2281 = vpack.c.b16 %v2275, %v2274
      %v2282 = vpack.c.b16 %v2277, %v2276
      %v2283 = vpack.c.b16 %v2279, %v2278
      %v2296 = vunpack.c.l.b16 %v1863
      %v2297 = vunpack.c.l.b16 %v1864
      %v2298 = vunpack.c.l.b16 %v1865
      %v2299 = vunpack.c.l.b16 %v1866
      %v2300 = vunpack.c.l.b16 %v1867
      %v2301 = vunpack.c.l.b16 %v1868
      %v2302 = vunpack.c.l.b16 %v1869
      %v2303 = vunpack.c.l.b16 %v1870
      %v2304 = vpack.c.b16 %v2297, %v2296
      %v2305 = vpack.c.b16 %v2299, %v2298
      %v2306 = vpack.c.b16 %v2301, %v2300
      %v2307 = vpack.c.b16 %v2303, %v2302
      %v2312 = vunpack.c.l.b16 %v1892
      %v2313 = vunpack.c.l.b16 %v1906
      %v2314 = vunpack.c.l.b16 %v1920
      %v2315 = vunpack.c.l.b16 %v1934
      %v2316 = vunpack.c.l.b16 %v1948
      %v2317 = vunpack.c.l.b16 %v1962
      %v2318 = vunpack.c.l.b16 %v1976
      %v2319 = vunpack.c.l.b16 %v1990
      %v2320 = vpack.c.b16 %v2313, %v2312
      %v2321 = vpack.c.b16 %v2315, %v2314
      %v2322 = vpack.c.b16 %v2317, %v2316
      %v2323 = vpack.c.b16 %v2319, %v2318
      %v2328 = vunpack.c.l.b16 %v2018
      %v2329 = vunpack.c.l.b16 %v2022
      %v2330 = vunpack.c.l.b16 %v2026
      %v2331 = vunpack.c.l.b16 %v2030
      %v2332 = vunpack.c.l.b16 %v2034
      %v2333 = vunpack.c.l.b16 %v2038
      %v2334 = vunpack.c.l.b16 %v2042
      %v2335 = vunpack.c.l.b16 %v2046
      %v2336 = vpack.c.b16 %v2329, %v2328
      %v2337 = vpack.c.b16 %v2331, %v2330
      %v2338 = vpack.c.b16 %v2333, %v2332
      %v2339 = vpack.c.b16 %v2335, %v2334
      %v2352 = vunpack.c.l.b16 %v2048
      %v2353 = vunpack.c.l.b16 %v2049
      %v2354 = vunpack.c.l.b16 %v2050
      %v2355 = vunpack.c.l.b16 %v2051
      %v2356 = vunpack.c.l.b16 %v2052
      %v2357 = vunpack.c.l.b16 %v2053
      %v2358 = vunpack.c.l.b16 %v2054
      %v2359 = vunpack.c.l.b16 %v2055
      %v2360 = vpack.c.b16 %v2353, %v2352
      %v2361 = vpack.c.b16 %v2355, %v2354
      %v2362 = vpack.c.b16 %v2357, %v2356
      %v2363 = vpack.c.b16 %v2359, %v2358
      %v2368 = vunpack.c.l.b16 %v2077
      %v2369 = vunpack.c.l.b16 %v2091
      %v2370 = vunpack.c.l.b16 %v2105
      %v2371 = vunpack.c.l.b16 %v2119
      %v2372 = vunpack.c.l.b16 %v2133
      %v2373 = vunpack.c.l.b16 %v2147
      %v2374 = vunpack.c.l.b16 %v2161
      %v2375 = vunpack.c.l.b16 %v2175
      %v2376 = vpack.c.b16 %v2369, %v2368
      %v2377 = vpack.c.b16 %v2371, %v2370
      %v2378 = vpack.c.b16 %v2373, %v2372
      %v2379 = vpack.c.b16 %v2375, %v2374
      %v2384 = vunpack.c.l.b16 %v2203
      %v2385 = vunpack.c.l.b16 %v2207
      %v2386 = vunpack.c.l.b16 %v2211
      %v2387 = vunpack.c.l.b16 %v2215
      %v2388 = vunpack.c.l.b16 %v2219
      %v2389 = vunpack.c.l.b16 %v2223
      %v2390 = vunpack.c.l.b16 %v2227
      %v2391 = vunpack.c.l.b16 %v2231
      %v2392 = vpack.c.b16 %v2385, %v2384
      %v2393 = vpack.c.b16 %v2387, %v2386
      %v2394 = vpack.c.b16 %v2389, %v2388
      %v2395 = vpack.c.b16 %v2391, %v2390
      %v2400 = vld [vmem:[%s4] sm:$0xf]
      %v2401 = vld [vmem:[%s4 + $0x4] sm:$0xf]
      %v2402 = vld [vmem:[%s4 + $0x8] sm:$0xf]
      %v2403 = vld [vmem:[%s4 + $0xc] sm:$0xf]
      %v2404 = vld [vmem:[%s4 + $0x10] sm:$0xf]
      %v2405 = vld [vmem:[%s4 + $0x14] sm:$0xf]
      %v2406 = vld [vmem:[%s4 + $0x18] sm:$0xf]
      %v2407 = vld [vmem:[%s4 + $0x1c] sm:$0xf]
      %v2408 = vld [vmem:[%s4 + $0x20] sm:$0xf]
      %v2409 = vld [vmem:[%s4 + $0x24] sm:$0xf]
      %v2410 = vld [vmem:[%s4 + $0x28] sm:$0xf]
      %v2411 = vld [vmem:[%s4 + $0x2c] sm:$0xf]
      %v2412 = vld [vmem:[%s4 + $0x30] sm:$0xf]
      %v2413 = vld [vmem:[%s4 + $0x34] sm:$0xf]
      %v2414 = vld [vmem:[%s4 + $0x38] sm:$0xf]
      %v2415 = vld [vmem:[%s4 + $0x3c] sm:$0xf]
      %v2416 = vld [vmem:[%s4 + $0x40] sm:$0xf]
      %v2417 = vld [vmem:[%s4 + $0x44] sm:$0xf]
      %v2418 = vld [vmem:[%s4 + $0x48] sm:$0xf]
      %v2419 = vld [vmem:[%s4 + $0x4c] sm:$0xf]
      %v2420 = vld [vmem:[%s4 + $0x50] sm:$0xf]
      %v2421 = vld [vmem:[%s4 + $0x54] sm:$0xf]
      %v2422 = vld [vmem:[%s4 + $0x58] sm:$0xf]
      %v2423 = vld [vmem:[%s4 + $0x5c] sm:$0xf]
      %v2424 = vld [vmem:[%s4 + $0x60] sm:$0xf]
      %v2425 = vld [vmem:[%s4 + $0x64] sm:$0xf]
      %v2426 = vld [vmem:[%s4 + $0x68] sm:$0xf]
      %v2427 = vld [vmem:[%s4 + $0x6c] sm:$0xf]
      %v2428 = vld [vmem:[%s4 + $0x70] sm:$0xf]
      %v2429 = vld [vmem:[%s4 + $0x74] sm:$0xf]
      %v2430 = vld [vmem:[%s4 + $0x78] sm:$0xf]
      %v2431 = vld [vmem:[%s4 + $0x7c] sm:$0xf]
      %v2432 = vld [vmem:[%s4 + $0x80] sm:$0xf]
      %v2433 = vld [vmem:[%s4 + $0x84] sm:$0xf]
      %v2434 = vld [vmem:[%s4 + $0x88] sm:$0xf]
      %v2435 = vld [vmem:[%s4 + $0x8c] sm:$0xf]
      %v2436 = vld [vmem:[%s4 + $0x90] sm:$0xf]
      %v2437 = vld [vmem:[%s4 + $0x94] sm:$0xf]
      %v2438 = vld [vmem:[%s4 + $0x98] sm:$0xf]
      %v2439 = vld [vmem:[%s4 + $0x9c] sm:$0xf]
      %v2440 = vld [vmem:[%s4 + $0xa0] sm:$0xf]
      %v2441 = vld [vmem:[%s4 + $0xa4] sm:$0xf]
      %v2442 = vld [vmem:[%s4 + $0xa8] sm:$0xf]
      %v2443 = vld [vmem:[%s4 + $0xac] sm:$0xf]
      %v2444 = vld [vmem:[%s4 + $0xb0] sm:$0xf]
      %v2445 = vld [vmem:[%s4 + $0xb4] sm:$0xf]
      %v2446 = vld [vmem:[%s4 + $0xb8] sm:$0xf]
      %v2447 = vld [vmem:[%s4 + $0xbc] sm:$0xf]
      %v2448 = vld [vmem:[%s4 + $0xc0] sm:$0xf]
      %v2449 = vld [vmem:[%s4 + $0xc4] sm:$0xf]
      %v2450 = vld [vmem:[%s4 + $0xc8] sm:$0xf]
      %v2451 = vld [vmem:[%s4 + $0xcc] sm:$0xf]
      %v2452 = vld [vmem:[%s4 + $0xd0] sm:$0xf]
      %v2453 = vld [vmem:[%s4 + $0xd4] sm:$0xf]
      %v2454 = vld [vmem:[%s4 + $0xd8] sm:$0xf]
      %v2455 = vld [vmem:[%s4 + $0xdc] sm:$0xf]
      %v2456 = vld [vmem:[%s4 + $0xe0] sm:$0xf]
      %v2457 = vld [vmem:[%s4 + $0xe4] sm:$0xf]
      %v2458 = vld [vmem:[%s4 + $0xe8] sm:$0xf]
      %v2459 = vld [vmem:[%s4 + $0xec] sm:$0xf]
      %v2460 = vld [vmem:[%s4 + $0xf0] sm:$0xf]
      %v2461 = vld [vmem:[%s4 + $0xf4] sm:$0xf]
      %v2462 = vld [vmem:[%s4 + $0xf8] sm:$0xf]
      %v2463 = vld [vmem:[%s4 + $0xfc] sm:$0xf]
      %v2464 = vld [vmem:[%s4 + $0x100] sm:$0xf]
      %v2465 = vld [vmem:[%s4 + $0x104] sm:$0xf]
      %v2466 = vld [vmem:[%s4 + $0x108] sm:$0xf]
      %v2467 = vld [vmem:[%s4 + $0x10c] sm:$0xf]
      %v2468 = vld [vmem:[%s4 + $0x110] sm:$0xf]
      %v2469 = vld [vmem:[%s4 + $0x114] sm:$0xf]
      %v2470 = vld [vmem:[%s4 + $0x118] sm:$0xf]
      %v2471 = vld [vmem:[%s4 + $0x11c] sm:$0xf]
      %v2472 = vld [vmem:[%s4 + $0x120] sm:$0xf]
      %v2473 = vld [vmem:[%s4 + $0x124] sm:$0xf]
      %v2474 = vld [vmem:[%s4 + $0x128] sm:$0xf]
      %v2475 = vld [vmem:[%s4 + $0x12c] sm:$0xf]
      %v2476 = vld [vmem:[%s4 + $0x130] sm:$0xf]
      %v2477 = vld [vmem:[%s4 + $0x134] sm:$0xf]
      %v2478 = vld [vmem:[%s4 + $0x138] sm:$0xf]
      %v2479 = vld [vmem:[%s4 + $0x13c] sm:$0xf]
      %v2480 = vld [vmem:[%s4 + $0x140] sm:$0xf]
      %v2481 = vld [vmem:[%s4 + $0x144] sm:$0xf]
      %v2482 = vld [vmem:[%s4 + $0x148] sm:$0xf]
      %v2483 = vld [vmem:[%s4 + $0x14c] sm:$0xf]
      %v2484 = vld [vmem:[%s4 + $0x150] sm:$0xf]
      %v2485 = vld [vmem:[%s4 + $0x154] sm:$0xf]
      %v2486 = vld [vmem:[%s4 + $0x158] sm:$0xf]
      %v2487 = vld [vmem:[%s4 + $0x15c] sm:$0xf]
      %v2488 = vld [vmem:[%s4 + $0x160] sm:$0xf]
      %v2489 = vld [vmem:[%s4 + $0x164] sm:$0xf]
      %v2490 = vld [vmem:[%s4 + $0x168] sm:$0xf]
      %v2491 = vld [vmem:[%s4 + $0x16c] sm:$0xf]
      %v2492 = vld [vmem:[%s4 + $0x170] sm:$0xf]
      %v2493 = vld [vmem:[%s4 + $0x174] sm:$0xf]
      %v2494 = vld [vmem:[%s4 + $0x178] sm:$0xf]
      %v2495 = vld [vmem:[%s4 + $0x17c] sm:$0xf]
      %v2496 = vld [vmem:[%s4 + $0x180] sm:$0xf]
      %v2497 = vld [vmem:[%s4 + $0x184] sm:$0xf]
      %v2498 = vld [vmem:[%s4 + $0x188] sm:$0xf]
      %v2499 = vld [vmem:[%s4 + $0x18c] sm:$0xf]
      %v2500 = vld [vmem:[%s4 + $0x190] sm:$0xf]
      %v2501 = vld [vmem:[%s4 + $0x194] sm:$0xf]
      %v2502 = vld [vmem:[%s4 + $0x198] sm:$0xf]
      %v2503 = vld [vmem:[%s4 + $0x19c] sm:$0xf]
      %v2504 = vld [vmem:[%s4 + $0x1a0] sm:$0xf]
      %v2505 = vld [vmem:[%s4 + $0x1a4] sm:$0xf]
      %v2506 = vld [vmem:[%s4 + $0x1a8] sm:$0xf]
      %v2507 = vld [vmem:[%s4 + $0x1ac] sm:$0xf]
      %v2508 = vld [vmem:[%s4 + $0x1b0] sm:$0xf]
      %v2509 = vld [vmem:[%s4 + $0x1b4] sm:$0xf]
      %v2510 = vld [vmem:[%s4 + $0x1b8] sm:$0xf]
      %v2511 = vld [vmem:[%s4 + $0x1bc] sm:$0xf]
      %v2512 = vld [vmem:[%s4 + $0x1c0] sm:$0xf]
      %v2513 = vld [vmem:[%s4 + $0x1c4] sm:$0xf]
      %v2514 = vld [vmem:[%s4 + $0x1c8] sm:$0xf]
      %v2515 = vld [vmem:[%s4 + $0x1cc] sm:$0xf]
      %v2516 = vld [vmem:[%s4 + $0x1d0] sm:$0xf]
      %v2517 = vld [vmem:[%s4 + $0x1d4] sm:$0xf]
      %v2518 = vld [vmem:[%s4 + $0x1d8] sm:$0xf]
      %v2519 = vld [vmem:[%s4 + $0x1dc] sm:$0xf]
      %v2520 = vld [vmem:[%s4 + $0x1e0] sm:$0xf]
      %v2521 = vld [vmem:[%s4 + $0x1e4] sm:$0xf]
      %v2522 = vld [vmem:[%s4 + $0x1e8] sm:$0xf]
      %v2523 = vld [vmem:[%s4 + $0x1ec] sm:$0xf]
      %v2524 = vld [vmem:[%s4 + $0x1f0] sm:$0xf]
      %v2525 = vld [vmem:[%s4 + $0x1f4] sm:$0xf]
      %v2526 = vld [vmem:[%s4 + $0x1f8] sm:$0xf]
      %v2527 = vld [vmem:[%s4 + $0x1fc] sm:$0xf]
      %v2528 = vld [vmem:[%s4 + $0x200] sm:$0xf]
      %v2529 = vld [vmem:[%s4 + $0x204] sm:$0xf]
      %v2530 = vld [vmem:[%s4 + $0x208] sm:$0xf]
      %v2531 = vld [vmem:[%s4 + $0x20c] sm:$0xf]
      %v2532 = vld [vmem:[%s4 + $0x210] sm:$0xf]
      %v2533 = vld [vmem:[%s4 + $0x214] sm:$0xf]
      %v2534 = vld [vmem:[%s4 + $0x218] sm:$0xf]
      %v2535 = vld [vmem:[%s4 + $0x21c] sm:$0xf]
      %v2536 = vld [vmem:[%s4 + $0x220] sm:$0xf]
      %v2537 = vld [vmem:[%s4 + $0x224] sm:$0xf]
      %v2538 = vld [vmem:[%s4 + $0x228] sm:$0xf]
      %v2539 = vld [vmem:[%s4 + $0x22c] sm:$0xf]
      %v2540 = vld [vmem:[%s4 + $0x230] sm:$0xf]
      %v2541 = vld [vmem:[%s4 + $0x234] sm:$0xf]
      %v2542 = vld [vmem:[%s4 + $0x238] sm:$0xf]
      %v2543 = vld [vmem:[%s4 + $0x23c] sm:$0xf]
      %v2688 = vunpack.c.l.b16 %v2400
      %v2689 = vunpack.c.l.b16 %v2401
      %v2690 = vunpack.c.l.b16 %v2402
      %v2691 = vunpack.c.l.b16 %v2403
      %v2692 = vunpack.c.l.b16 %v2404
      %v2693 = vunpack.c.l.b16 %v2405
      %v2694 = vunpack.c.l.b16 %v2406
      %v2695 = vunpack.c.l.b16 %v2407
      %v2696 = vunpack.c.l.b16 %v2408
      %v2697 = vunpack.c.l.b16 %v2409
      %v2698 = vunpack.c.l.b16 %v2410
      %v2699 = vunpack.c.l.b16 %v2411
      %v2700 = vunpack.c.l.b16 %v2412
      %v2701 = vunpack.c.l.b16 %v2413
      %v2702 = vunpack.c.l.b16 %v2414
      %v2703 = vunpack.c.l.b16 %v2415
      %v2704 = vunpack.c.l.b16 %v2416
      %v2705 = vunpack.c.l.b16 %v2417
      %v2706 = vunpack.c.l.b16 %v2418
      %v2707 = vunpack.c.l.b16 %v2419
      %v2708 = vunpack.c.l.b16 %v2420
      %v2709 = vunpack.c.l.b16 %v2421
      %v2710 = vunpack.c.l.b16 %v2422
      %v2711 = vunpack.c.l.b16 %v2423
      %v2712 = vunpack.c.l.b16 %v2424
      %v2713 = vunpack.c.l.b16 %v2425
      %v2714 = vunpack.c.l.b16 %v2426
      %v2715 = vunpack.c.l.b16 %v2427
      %v2716 = vunpack.c.l.b16 %v2428
      %v2717 = vunpack.c.l.b16 %v2429
      %v2718 = vunpack.c.l.b16 %v2430
      %v2719 = vunpack.c.l.b16 %v2431
      %v2720 = vunpack.c.l.b16 %v2432
      %v2721 = vunpack.c.l.b16 %v2433
      %v2722 = vunpack.c.l.b16 %v2434
      %v2723 = vunpack.c.l.b16 %v2435
      %v2724 = vunpack.c.l.b16 %v2436
      %v2725 = vunpack.c.l.b16 %v2437
      %v2726 = vunpack.c.l.b16 %v2438
      %v2727 = vunpack.c.l.b16 %v2439
      %v2728 = vunpack.c.l.b16 %v2440
      %v2729 = vunpack.c.l.b16 %v2441
      %v2730 = vunpack.c.l.b16 %v2442
      %v2731 = vunpack.c.l.b16 %v2443
      %v2732 = vunpack.c.l.b16 %v2444
      %v2733 = vunpack.c.l.b16 %v2445
      %v2734 = vunpack.c.l.b16 %v2446
      %v2735 = vunpack.c.l.b16 %v2447
      %v2736 = vunpack.c.l.b16 %v2448
      %v2737 = vunpack.c.l.b16 %v2449
      %v2738 = vunpack.c.l.b16 %v2450
      %v2739 = vunpack.c.l.b16 %v2451
      %v2740 = vunpack.c.l.b16 %v2452
      %v2741 = vunpack.c.l.b16 %v2453
      %v2742 = vunpack.c.l.b16 %v2454
      %v2743 = vunpack.c.l.b16 %v2455
      %v2744 = vunpack.c.l.b16 %v2456
      %v2745 = vunpack.c.l.b16 %v2457
      %v2746 = vunpack.c.l.b16 %v2458
      %v2747 = vunpack.c.l.b16 %v2459
      %v2748 = vunpack.c.l.b16 %v2460
      %v2749 = vunpack.c.l.b16 %v2461
      %v2750 = vunpack.c.l.b16 %v2462
      %v2751 = vunpack.c.l.b16 %v2463
      %v2752 = vunpack.c.l.b16 %v2464
      %v2753 = vunpack.c.l.b16 %v2465
      %v2754 = vunpack.c.l.b16 %v2466
      %v2755 = vunpack.c.l.b16 %v2467
      %v2756 = vunpack.c.l.b16 %v2468
      %v2757 = vunpack.c.l.b16 %v2469
      %v2758 = vunpack.c.l.b16 %v2470
      %v2759 = vunpack.c.l.b16 %v2471
      %v2760 = vunpack.c.l.b16 %v2472
      %v2761 = vunpack.c.l.b16 %v2473
      %v2762 = vunpack.c.l.b16 %v2474
      %v2763 = vunpack.c.l.b16 %v2475
      %v2764 = vunpack.c.l.b16 %v2476
      %v2765 = vunpack.c.l.b16 %v2477
      %v2766 = vunpack.c.l.b16 %v2478
      %v2767 = vunpack.c.l.b16 %v2479
      %v2768 = vunpack.c.l.b16 %v2480
      %v2769 = vunpack.c.l.b16 %v2481
      %v2770 = vunpack.c.l.b16 %v2482
      %v2771 = vunpack.c.l.b16 %v2483
      %v2772 = vunpack.c.l.b16 %v2484
      %v2773 = vunpack.c.l.b16 %v2485
      %v2774 = vunpack.c.l.b16 %v2486
      %v2775 = vunpack.c.l.b16 %v2487
      %v2776 = vunpack.c.l.b16 %v2488
      %v2777 = vunpack.c.l.b16 %v2489
      %v2778 = vunpack.c.l.b16 %v2490
      %v2779 = vunpack.c.l.b16 %v2491
      %v2780 = vunpack.c.l.b16 %v2492
      %v2781 = vunpack.c.l.b16 %v2493
      %v2782 = vunpack.c.l.b16 %v2494
      %v2783 = vunpack.c.l.b16 %v2495
      %v2784 = vunpack.c.l.b16 %v2496
      %v2785 = vunpack.c.l.b16 %v2497
      %v2786 = vunpack.c.l.b16 %v2498
      %v2787 = vunpack.c.l.b16 %v2499
      %v2788 = vunpack.c.l.b16 %v2500
      %v2789 = vunpack.c.l.b16 %v2501
      %v2790 = vunpack.c.l.b16 %v2502
      %v2791 = vunpack.c.l.b16 %v2503
      %v2792 = vunpack.c.l.b16 %v2504
      %v2793 = vunpack.c.l.b16 %v2505
      %v2794 = vunpack.c.l.b16 %v2506
      %v2795 = vunpack.c.l.b16 %v2507
      %v2796 = vunpack.c.l.b16 %v2508
      %v2797 = vunpack.c.l.b16 %v2509
      %v2798 = vunpack.c.l.b16 %v2510
      %v2799 = vunpack.c.l.b16 %v2511
      %v2800 = vunpack.c.l.b16 %v2512
      %v2801 = vunpack.c.l.b16 %v2513
      %v2802 = vunpack.c.l.b16 %v2514
      %v2803 = vunpack.c.l.b16 %v2515
      %v2804 = vunpack.c.l.b16 %v2516
      %v2805 = vunpack.c.l.b16 %v2517
      %v2806 = vunpack.c.l.b16 %v2518
      %v2807 = vunpack.c.l.b16 %v2519
      %v2808 = vunpack.c.l.b16 %v2520
      %v2809 = vunpack.c.l.b16 %v2521
      %v2810 = vunpack.c.l.b16 %v2522
      %v2811 = vunpack.c.l.b16 %v2523
      %v2812 = vunpack.c.l.b16 %v2524
      %v2813 = vunpack.c.l.b16 %v2525
      %v2814 = vunpack.c.l.b16 %v2526
      %v2815 = vunpack.c.l.b16 %v2527
      %v2816 = vunpack.c.l.b16 %v2528
      %v2817 = vunpack.c.l.b16 %v2529
      %v2818 = vunpack.c.l.b16 %v2530
      %v2819 = vunpack.c.l.b16 %v2531
      %v2820 = vunpack.c.l.b16 %v2532
      %v2821 = vunpack.c.l.b16 %v2533
      %v2822 = vunpack.c.l.b16 %v2534
      %v2823 = vunpack.c.l.b16 %v2535
      %v2824 = vunpack.c.l.b16 %v2536
      %v2825 = vunpack.c.l.b16 %v2537
      %v2826 = vunpack.c.l.b16 %v2538
      %v2827 = vunpack.c.l.b16 %v2539
      %v2828 = vunpack.c.l.b16 %v2540
      %v2829 = vunpack.c.l.b16 %v2541
      %v2830 = vunpack.c.l.b16 %v2542
      %v2831 = vunpack.c.l.b16 %v2543
      %v2832 = vpack.c.b16 %v2689, %v2688
      %v2833 = vpack.c.b16 %v2691, %v2690
      %v2834 = vpack.c.b16 %v2693, %v2692
      %v2835 = vpack.c.b16 %v2695, %v2694
      %v2836 = vpack.c.b16 %v2697, %v2696
      %v2837 = vpack.c.b16 %v2699, %v2698
      %v2838 = vpack.c.b16 %v2701, %v2700
      %v2839 = vpack.c.b16 %v2703, %v2702
      %v2840 = vpack.c.b16 %v2705, %v2704
      %v2841 = vpack.c.b16 %v2707, %v2706
      %v2842 = vpack.c.b16 %v2709, %v2708
      %v2843 = vpack.c.b16 %v2711, %v2710
      %v2844 = vpack.c.b16 %v2713, %v2712
      %v2845 = vpack.c.b16 %v2715, %v2714
      %v2846 = vpack.c.b16 %v2717, %v2716
      %v2847 = vpack.c.b16 %v2719, %v2718
      %v2848 = vpack.c.b16 %v2721, %v2720
      %v2849 = vpack.c.b16 %v2723, %v2722
      %v2850 = vpack.c.b16 %v2725, %v2724
      %v2851 = vpack.c.b16 %v2727, %v2726
      %v2852 = vpack.c.b16 %v2729, %v2728
      %v2853 = vpack.c.b16 %v2731, %v2730
      %v2854 = vpack.c.b16 %v2733, %v2732
      %v2855 = vpack.c.b16 %v2735, %v2734
      %v2856 = vpack.c.b16 %v2737, %v2736
      %v2857 = vpack.c.b16 %v2739, %v2738
      %v2858 = vpack.c.b16 %v2741, %v2740
      %v2859 = vpack.c.b16 %v2743, %v2742
      %v2860 = vpack.c.b16 %v2745, %v2744
      %v2861 = vpack.c.b16 %v2747, %v2746
      %v2862 = vpack.c.b16 %v2749, %v2748
      %v2863 = vpack.c.b16 %v2751, %v2750
      %v2864 = vpack.c.b16 %v2753, %v2752
      %v2865 = vpack.c.b16 %v2755, %v2754
      %v2866 = vpack.c.b16 %v2757, %v2756
      %v2867 = vpack.c.b16 %v2759, %v2758
      %v2868 = vpack.c.b16 %v2761, %v2760
      %v2869 = vpack.c.b16 %v2763, %v2762
      %v2870 = vpack.c.b16 %v2765, %v2764
      %v2871 = vpack.c.b16 %v2767, %v2766
      %v2872 = vpack.c.b16 %v2769, %v2768
      %v2873 = vpack.c.b16 %v2771, %v2770
      %v2874 = vpack.c.b16 %v2773, %v2772
      %v2875 = vpack.c.b16 %v2775, %v2774
      %v2876 = vpack.c.b16 %v2777, %v2776
      %v2877 = vpack.c.b16 %v2779, %v2778
      %v2878 = vpack.c.b16 %v2781, %v2780
      %v2879 = vpack.c.b16 %v2783, %v2782
      %v2880 = vpack.c.b16 %v2785, %v2784
      %v2881 = vpack.c.b16 %v2787, %v2786
      %v2882 = vpack.c.b16 %v2789, %v2788
      %v2883 = vpack.c.b16 %v2791, %v2790
      %v2884 = vpack.c.b16 %v2793, %v2792
      %v2885 = vpack.c.b16 %v2795, %v2794
      %v2886 = vpack.c.b16 %v2797, %v2796
      %v2887 = vpack.c.b16 %v2799, %v2798
      %v2888 = vpack.c.b16 %v2801, %v2800
      %v2889 = vpack.c.b16 %v2803, %v2802
      %v2890 = vpack.c.b16 %v2805, %v2804
      %v2891 = vpack.c.b16 %v2807, %v2806
      %v2892 = vpack.c.b16 %v2809, %v2808
      %v2893 = vpack.c.b16 %v2811, %v2810
      %v2894 = vpack.c.b16 %v2813, %v2812
      %v2895 = vpack.c.b16 %v2815, %v2814
      %v2896 = vpack.c.b16 %v2817, %v2816
      %v2897 = vpack.c.b16 %v2819, %v2818
      %v2898 = vpack.c.b16 %v2821, %v2820
      %v2899 = vpack.c.b16 %v2823, %v2822
      %v2900 = vpack.c.b16 %v2825, %v2824
      %v2901 = vpack.c.b16 %v2827, %v2826
      %v2902 = vpack.c.b16 %v2829, %v2828
      %v2903 = vpack.c.b16 %v2831, %v2830
      %2976 = vmatpush.bf16.msra.mxu0 %v2839
      %2977 = vmatpush.bf16.msra.mxu0 %v2838
      %2978 = vmatpush.bf16.msra.mxu0 %v2837
      %2979 = vmatpush.bf16.msra.mxu0 %v2836
      %2980 = vmatpush.bf16.msra.mxu0 %v2835
      %2981 = vmatpush.bf16.msra.mxu0 %v2834
      %2982 = vmatpush.bf16.msra.mxu0 %v2833
      %2983 = vmatpush.bf16.msra.mxu0 %v2832
      %2984 = vmatmul.bf16.gmra.mxu0 %v2248
      %v2985 = vpop.f32.mrf.mxu0
      %v2986 = vadd.f32 0.0, %v2985
      %v2987 = vpop.f32.mrf.mxu0
      %v2988 = vadd.f32 0.0, %v2987
      %2989 = vmatmul.bf16.gmra.mxu0 %v2249
      %v2990 = vpop.f32.mrf.mxu0
      %v2991 = vadd.f32 0.0, %v2990
      %v2992 = vpop.f32.mrf.mxu0
      %v2993 = vadd.f32 0.0, %v2992
      %2994 = vmatmul.bf16.gmra.mxu0 %v2250
      %v2995 = vpop.f32.mrf.mxu0
      %v2996 = vadd.f32 0.0, %v2995
      %v2997 = vpop.f32.mrf.mxu0
      %v2998 = vadd.f32 0.0, %v2997
      %2999 = vmatmul.bf16.gmra.mxu0 %v2251
      %v3000 = vpop.f32.mrf.mxu0
      %v3001 = vadd.f32 0.0, %v3000
      %v3002 = vpop.f32.mrf.mxu0
      %v3003 = vadd.f32 0.0, %v3002
      %3004 = vdwg.mxu0
      %3005 = vmatpush.bf16.msra.mxu0 %v2847
      %3006 = vmatpush.bf16.msra.mxu0 %v2846
      %3007 = vmatpush.bf16.msra.mxu0 %v2845
      %3008 = vmatpush.bf16.msra.mxu0 %v2844
      %3009 = vmatpush.bf16.msra.mxu0 %v2843
      %3010 = vmatpush.bf16.msra.mxu0 %v2842
      %3011 = vmatpush.bf16.msra.mxu0 %v2841
      %3012 = vmatpush.bf16.msra.mxu0 %v2840
      %3013 = vmatmul.bf16.gmra.mxu0 %v2264
      %v3014 = vpop.f32.mrf.mxu0
      %v3015 = vadd.f32 %v2986, %v3014
      %v3016 = vpop.f32.mrf.mxu0
      %v3017 = vadd.f32 %v2988, %v3016
      %3018 = vmatmul.bf16.gmra.mxu0 %v2265
      %v3019 = vpop.f32.mrf.mxu0
      %v3020 = vadd.f32 %v2991, %v3019
      %v3021 = vpop.f32.mrf.mxu0
      %v3022 = vadd.f32 %v2993, %v3021
      %3023 = vmatmul.bf16.gmra.mxu0 %v2266
      %v3024 = vpop.f32.mrf.mxu0
      %v3025 = vadd.f32 %v2996, %v3024
      %v3026 = vpop.f32.mrf.mxu0
      %v3027 = vadd.f32 %v2998, %v3026
      %3028 = vmatmul.bf16.gmra.mxu0 %v2267
      %v3029 = vpop.f32.mrf.mxu0
      %v3030 = vadd.f32 %v3001, %v3029
      %v3031 = vpop.f32.mrf.mxu0
      %v3032 = vadd.f32 %v3003, %v3031
      %3033 = vdwg.mxu0
      %3034 = vmatpush.bf16.msra.mxu0 %v2855
      %3035 = vmatpush.bf16.msra.mxu0 %v2854
      %3036 = vmatpush.bf16.msra.mxu0 %v2853
      %3037 = vmatpush.bf16.msra.mxu0 %v2852
      %3038 = vmatpush.bf16.msra.mxu0 %v2851
      %3039 = vmatpush.bf16.msra.mxu0 %v2850
      %3040 = vmatpush.bf16.msra.mxu0 %v2849
      %3041 = vmatpush.bf16.msra.mxu0 %v2848
      %3042 = vmatmul.bf16.gmra.mxu0 %v2280
      %v3043 = vpop.f32.mrf.mxu0
      %v3044 = vadd.f32 %v3015, %v3043
      %v3045 = vpop.f32.mrf.mxu0
      %v3046 = vadd.f32 %v3017, %v3045
      %3047 = vmatmul.bf16.gmra.mxu0 %v2281
      %v3048 = vpop.f32.mrf.mxu0
      %v3049 = vadd.f32 %v3020, %v3048
      %v3050 = vpop.f32.mrf.mxu0
      %v3051 = vadd.f32 %v3022, %v3050
      %3052 = vmatmul.bf16.gmra.mxu0 %v2282
      %v3053 = vpop.f32.mrf.mxu0
      %v3054 = vadd.f32 %v3025, %v3053
      %v3055 = vpop.f32.mrf.mxu0
      %v3056 = vadd.f32 %v3027, %v3055
      %3057 = vmatmul.bf16.gmra.mxu0 %v2283
      %v3058 = vpop.f32.mrf.mxu0
      %v3059 = vadd.f32 %v3030, %v3058
      %v3060 = vpop.f32.mrf.mxu0
      %v3061 = vadd.f32 %v3032, %v3060
      %3062 = vdwg.mxu0
      %3063 = vmatpush.bf16.msra.mxu0 %v2863
      %3064 = vmatpush.bf16.msra.mxu0 %v2862
      %3065 = vmatpush.bf16.msra.mxu0 %v2861
      %3066 = vmatpush.bf16.msra.mxu0 %v2860
      %3067 = vmatpush.bf16.msra.mxu0 %v2859
      %3068 = vmatpush.bf16.msra.mxu0 %v2858
      %3069 = vmatpush.bf16.msra.mxu0 %v2857
      %3070 = vmatpush.bf16.msra.mxu0 %v2856
      %3071 = vmatmul.bf16.gmra.mxu0 %v2304
      %v3072 = vpop.f32.mrf.mxu0
      %v3073 = vadd.f32 %v3044, %v3072
      %v3074 = vpop.f32.mrf.mxu0
      %v3075 = vadd.f32 %v3046, %v3074
      %3076 = vmatmul.bf16.gmra.mxu0 %v2305
      %v3077 = vpop.f32.mrf.mxu0
      %v3078 = vadd.f32 %v3049, %v3077
      %v3079 = vpop.f32.mrf.mxu0
      %v3080 = vadd.f32 %v3051, %v3079
      %3081 = vmatmul.bf16.gmra.mxu0 %v2306
      %v3082 = vpop.f32.mrf.mxu0
      %v3083 = vadd.f32 %v3054, %v3082
      %v3084 = vpop.f32.mrf.mxu0
      %v3085 = vadd.f32 %v3056, %v3084
      %3086 = vmatmul.bf16.gmra.mxu0 %v2307
      %v3087 = vpop.f32.mrf.mxu0
      %v3088 = vadd.f32 %v3059, %v3087
      %v3089 = vpop.f32.mrf.mxu0
      %v3090 = vadd.f32 %v3061, %v3089
      %3091 = vdwg.mxu0
      %3092 = vmatpush.bf16.msra.mxu0 %v2871
      %3093 = vmatpush.bf16.msra.mxu0 %v2870
      %3094 = vmatpush.bf16.msra.mxu0 %v2869
      %3095 = vmatpush.bf16.msra.mxu0 %v2868
      %3096 = vmatpush.bf16.msra.mxu0 %v2867
      %3097 = vmatpush.bf16.msra.mxu0 %v2866
      %3098 = vmatpush.bf16.msra.mxu0 %v2865
      %3099 = vmatpush.bf16.msra.mxu0 %v2864
      %3100 = vmatmul.bf16.gmra.mxu0 %v2320
      %v3101 = vpop.f32.mrf.mxu0
      %v3102 = vadd.f32 %v3073, %v3101
      %v3103 = vpop.f32.mrf.mxu0
      %v3104 = vadd.f32 %v3075, %v3103
      %3105 = vmatmul.bf16.gmra.mxu0 %v2321
      %v3106 = vpop.f32.mrf.mxu0
      %v3107 = vadd.f32 %v3078, %v3106
      %v3108 = vpop.f32.mrf.mxu0
      %v3109 = vadd.f32 %v3080, %v3108
      %3110 = vmatmul.bf16.gmra.mxu0 %v2322
      %v3111 = vpop.f32.mrf.mxu0
      %v3112 = vadd.f32 %v3083, %v3111
      %v3113 = vpop.f32.mrf.mxu0
      %v3114 = vadd.f32 %v3085, %v3113
      %3115 = vmatmul.bf16.gmra.mxu0 %v2323
      %v3116 = vpop.f32.mrf.mxu0
      %v3117 = vadd.f32 %v3088, %v3116
      %v3118 = vpop.f32.mrf.mxu0
      %v3119 = vadd.f32 %v3090, %v3118
      %3120 = vdwg.mxu0
      %3121 = vmatpush.bf16.msra.mxu0 %v2879
      %3122 = vmatpush.bf16.msra.mxu0 %v2878
      %3123 = vmatpush.bf16.msra.mxu0 %v2877
      %3124 = vmatpush.bf16.msra.mxu0 %v2876
      %3125 = vmatpush.bf16.msra.mxu0 %v2875
      %3126 = vmatpush.bf16.msra.mxu0 %v2874
      %3127 = vmatpush.bf16.msra.mxu0 %v2873
      %3128 = vmatpush.bf16.msra.mxu0 %v2872
      %3129 = vmatmul.bf16.gmra.mxu0 %v2336
      %v3130 = vpop.f32.mrf.mxu0
      %v3131 = vadd.f32 %v3102, %v3130
      %v3132 = vpop.f32.mrf.mxu0
      %v3133 = vadd.f32 %v3104, %v3132
      %3134 = vmatmul.bf16.gmra.mxu0 %v2337
      %v3135 = vpop.f32.mrf.mxu0
      %v3136 = vadd.f32 %v3107, %v3135
      %v3137 = vpop.f32.mrf.mxu0
      %v3138 = vadd.f32 %v3109, %v3137
      %3139 = vmatmul.bf16.gmra.mxu0 %v2338
      %v3140 = vpop.f32.mrf.mxu0
      %v3141 = vadd.f32 %v3112, %v3140
      %v3142 = vpop.f32.mrf.mxu0
      %v3143 = vadd.f32 %v3114, %v3142
      %3144 = vmatmul.bf16.gmra.mxu0 %v2339
      %v3145 = vpop.f32.mrf.mxu0
      %v3146 = vadd.f32 %v3117, %v3145
      %v3147 = vpop.f32.mrf.mxu0
      %v3148 = vadd.f32 %v3119, %v3147
      %3149 = vdwg.mxu0
      %3150 = vmatpush.bf16.msra.mxu0 %v2887
      %3151 = vmatpush.bf16.msra.mxu0 %v2886
      %3152 = vmatpush.bf16.msra.mxu0 %v2885
      %3153 = vmatpush.bf16.msra.mxu0 %v2884
      %3154 = vmatpush.bf16.msra.mxu0 %v2883
      %3155 = vmatpush.bf16.msra.mxu0 %v2882
      %3156 = vmatpush.bf16.msra.mxu0 %v2881
      %3157 = vmatpush.bf16.msra.mxu0 %v2880
      %3158 = vmatmul.bf16.gmra.mxu0 %v2360
      %v3159 = vpop.f32.mrf.mxu0
      %v3160 = vadd.f32 %v3131, %v3159
      %v3161 = vpop.f32.mrf.mxu0
      %v3162 = vadd.f32 %v3133, %v3161
      %3163 = vmatmul.bf16.gmra.mxu0 %v2361
      %v3164 = vpop.f32.mrf.mxu0
      %v3165 = vadd.f32 %v3136, %v3164
      %v3166 = vpop.f32.mrf.mxu0
      %v3167 = vadd.f32 %v3138, %v3166
      %3168 = vmatmul.bf16.gmra.mxu0 %v2362
      %v3169 = vpop.f32.mrf.mxu0
      %v3170 = vadd.f32 %v3141, %v3169
      %v3171 = vpop.f32.mrf.mxu0
      %v3172 = vadd.f32 %v3143, %v3171
      %3173 = vmatmul.bf16.gmra.mxu0 %v2363
      %v3174 = vpop.f32.mrf.mxu0
      %v3175 = vadd.f32 %v3146, %v3174
      %v3176 = vpop.f32.mrf.mxu0
      %v3177 = vadd.f32 %v3148, %v3176
      %3178 = vdwg.mxu0
      %3179 = vmatpush.bf16.msra.mxu0 %v2895
      %3180 = vmatpush.bf16.msra.mxu0 %v2894
      %3181 = vmatpush.bf16.msra.mxu0 %v2893
      %3182 = vmatpush.bf16.msra.mxu0 %v2892
      %3183 = vmatpush.bf16.msra.mxu0 %v2891
      %3184 = vmatpush.bf16.msra.mxu0 %v2890
      %3185 = vmatpush.bf16.msra.mxu0 %v2889
      %3186 = vmatpush.bf16.msra.mxu0 %v2888
      %3187 = vmatmul.bf16.gmra.mxu0 %v2376
      %v3188 = vpop.f32.mrf.mxu0
      %v3189 = vadd.f32 %v3160, %v3188
      %v3190 = vpop.f32.mrf.mxu0
      %v3191 = vadd.f32 %v3162, %v3190
      %3192 = vmatmul.bf16.gmra.mxu0 %v2377
      %v3193 = vpop.f32.mrf.mxu0
      %v3194 = vadd.f32 %v3165, %v3193
      %v3195 = vpop.f32.mrf.mxu0
      %v3196 = vadd.f32 %v3167, %v3195
      %3197 = vmatmul.bf16.gmra.mxu0 %v2378
      %v3198 = vpop.f32.mrf.mxu0
      %v3199 = vadd.f32 %v3170, %v3198
      %v3200 = vpop.f32.mrf.mxu0
      %v3201 = vadd.f32 %v3172, %v3200
      %3202 = vmatmul.bf16.gmra.mxu0 %v2379
      %v3203 = vpop.f32.mrf.mxu0
      %v3204 = vadd.f32 %v3175, %v3203
      %v3205 = vpop.f32.mrf.mxu0
      %v3206 = vadd.f32 %v3177, %v3205
      %3207 = vdwg.mxu0
      %3208 = vmatpush.bf16.msra.mxu0 %v2903
      %3209 = vmatpush.bf16.msra.mxu0 %v2902
      %3210 = vmatpush.bf16.msra.mxu0 %v2901
      %3211 = vmatpush.bf16.msra.mxu0 %v2900
      %3212 = vmatpush.bf16.msra.mxu0 %v2899
      %3213 = vmatpush.bf16.msra.mxu0 %v2898
      %3214 = vmatpush.bf16.msra.mxu0 %v2897
      %3215 = vmatpush.bf16.msra.mxu0 %v2896
      %3216 = vmatmul.bf16.gmra.mxu0 %v2392
      %v3217 = vpop.f32.mrf.mxu0
      %v3218 = vadd.f32 %v3189, %v3217
      %v3219 = vpop.f32.mrf.mxu0
      %v3220 = vadd.f32 %v3191, %v3219
      %3221 = vmatmul.bf16.gmra.mxu0 %v2393
      %v3222 = vpop.f32.mrf.mxu0
      %v3223 = vadd.f32 %v3194, %v3222
      %v3224 = vpop.f32.mrf.mxu0
      %v3225 = vadd.f32 %v3196, %v3224
      %3226 = vmatmul.bf16.gmra.mxu0 %v2394
      %v3227 = vpop.f32.mrf.mxu0
      %v3228 = vadd.f32 %v3199, %v3227
      %v3229 = vpop.f32.mrf.mxu0
      %v3230 = vadd.f32 %v3201, %v3229
      %3231 = vmatmul.bf16.gmra.mxu0 %v2395
      %v3232 = vpop.f32.mrf.mxu0
      %v3233 = vadd.f32 %v3204, %v3232
      %v3234 = vpop.f32.mrf.mxu0
      %v3235 = vadd.f32 %v3206, %v3234
      %3236 = vdwg.mxu0
      %v3237 = vld [vmem:[%s5] sm:$0x1]
      %v3239 = vperm.slane %v3237, 0
      %v3241 = vmul.f32 %v3218, %v3239
      %v3242 = vmul.f32 %v3220, %v3239
      %v3243 = vmul.f32 %v3223, %v3239
      %v3244 = vmul.f32 %v3225, %v3239
      %v3245 = vmul.f32 %v3228, %v3239
      %v3246 = vmul.f32 %v3230, %v3239
      %v3247 = vmul.f32 %v3233, %v3239
      %v3248 = vmul.f32 %v3235, %v3239
      %v3249 = vld [vmem:[%s6] sm:$0x1]
      %v3251 = vperm.slane %v3249, 0
      %v3253 = vadd.f32 %v3241, %v3251
      %v3254 = vadd.f32 %v3242, %v3251
      %v3255 = vadd.f32 %v3243, %v3251
      %v3256 = vadd.f32 %v3244, %v3251
      %v3257 = vadd.f32 %v3245, %v3251
      %v3258 = vadd.f32 %v3246, %v3251
      %v3259 = vadd.f32 %v3247, %v3251
      %v3260 = vadd.f32 %v3248, %v3251
      %v3261 = vmax.f32 %v3253, 0.0
      %v3262 = vmax.f32 %v3254, 0.0
      %v3263 = vmax.f32 %v3255, 0.0
      %v3264 = vmax.f32 %v3256, 0.0
      %v3265 = vmax.f32 %v3257, 0.0
      %v3266 = vmax.f32 %v3258, 0.0
      %v3267 = vmax.f32 %v3259, 0.0
      %v3268 = vmax.f32 %v3260, 0.0
      %3269 = vst [vmem:[%s278] sm:$0xff] %v3261
      %3270 = vst [vmem:[%s278 + $0x8] sm:$0xff] %v3262
      %3271 = vst [vmem:[%s278 + $0x10] sm:$0xff] %v3263
      %3272 = vst [vmem:[%s278 + $0x18] sm:$0xff] %v3264
      %3273 = vst [vmem:[%s278 + $0x20] sm:$0xff] %v3265
      %3274 = vst [vmem:[%s278 + $0x28] sm:$0xff] %v3266
      %3275 = vst [vmem:[%s278 + $0x30] sm:$0xff] %v3267
      %3276 = vst [vmem:[%s278 + $0x38] sm:$0xff] %v3268
      %p3277 = scmp.lt.s32.totalorder %s18, 1
      %s3278 = scalar_select %p3277, %s18, 1
      %s3279 = smul.addr %s3278, 8
      %s3280 = smul.addr %s3279, 8
      %s3281 = scalar_lea.vmem %s7, %s3280
      // Predicated region
      $region49: #{encoder_block_yb_forward.1} parent=47 // pred_check
        %p3282 = pneg %p188
      $region50: #{encoder_block_yb_forward.1} parent=47 // pred_check_branch
        %3284 = sbr.rel (%p3282) target = $region52
      $region51: #{encoder_block_yb_forward.1} parent=47 // pred_region
        _
      $region52: #{encoder_block_yb_forward.1} parent=47 // pred_fallthru
        _
    $region48: #{encoder_block_yb_forward.1} parent=5 // pred_fallthru
      _
    %p3285 = scmp.le.s32.totalorder 2, %s13
    // Predicated region
    $region53: #{encoder_block_yb_forward.1} parent=5 // pred_check
      %p3286 = pneg %p3285
    $region54: #{encoder_block_yb_forward.1} parent=5 // pred_check_branch
      %3288 = sbr.rel (%p3286) target = $region56
    $region55: #{encoder_block_yb_forward.1} parent=5 // pred_region
      %s3289 = ssub.s32 %s13, 2
      // Predicated region
      $region57: #{encoder_block_yb_forward.1} parent=55 // pred_check
        %p3290 = pneg %p194
      $region58: #{encoder_block_yb_forward.1} parent=55 // pred_check_branch
        %3292 = sbr.rel (%p3290) target = $region60
      $region59: #{encoder_block_yb_forward.1} parent=55 // pred_region
        %p3293 = scmp.lt.s32.totalorder %s19, 1
        %s3294 = scalar_select %p3293, %s19, 1
        %s3295 = smul.addr %s3294, 8
        %s3296 = smul.addr %s3295, 8
        %s3297 = scalar_lea.vmem %s7, %s3296
      $region60: #{encoder_block_yb_forward.1} parent=55 // pred_fallthru
        _
    $region56: #{encoder_block_yb_forward.1} parent=5 // pred_fallthru
      _
  $region6: #{encoder_block_yb_forward.1} parent=0 // loop_footer
    %s17 = sadd.s32 1, %s13
  $region7: #{encoder_block_yb_forward.1} parent=0 // loop_footer_branch
    %12 = sbr.rel target = $region3
  $region8: #{encoder_block_yb_forward.1} parent=0 // loop_exit
    _

</llo_original>
